<compile_context>
chip_gen: v7x
topology: tpu7x:2x2x1
jax: 0.10.0
libtpu: 0.0.40
codegen_flags: <defaults>
</compile_context>

<pallas_src>
import functools

import jax
import jax.numpy as jnp
from jax.experimental import pallas as pl
from jax.experimental.pallas import tpu as pltpu


# ---------------------------------------------------------------------------
# Fused kernel: two (Conv3x3 + bias + GroupNorm + ReLU) stages, one batch elem
# ---------------------------------------------------------------------------
def _fused_cbr2_kernel(x_ref, w1_ref, b1_ref, g1_ref, be1_ref,
                       w2_ref, b2_ref, g2_ref, be2_ref, gmat_ref, o_ref,
                       *, H, n_lanes, inv_n, eps):
    f32 = jnp.float32

    # Row-shift selection matrices (H x H), built once on the VPU.
    r = jax.lax.broadcasted_iota(jnp.int32, (H, H), 0)
    c = jax.lax.broadcasted_iota(jnp.int32, (H, H), 1)
    down = (c == r - 1).astype(f32)   # (down @ P)[h] = P[h-1], zero at h=0
    up = (c == r + 1).astype(f32)     # (up   @ P)[h] = P[h+1], zero at h=H-1
    gm = gmat_ref[...]                # (W*Cout, W*Cout) group aggregation

    def cbr(x2d, wcat_ref, b_ref, gamma_ref, beta_ref):
        # x2d: (H, W*C_in) f32, lanes packed as w*C_in + ci.
        # Single im2col-style matmul: K = W*C_in, N = 3*W*Cout.
        p = jnp.dot(x2d.astype(jnp.bfloat16), wcat_ref[...],
                    preferred_element_type=f32)              # (H, 3*n_lanes)
        p0 = p[:, 0 * n_lanes:1 * n_lanes]                   # kernel row dy=0
        p1 = p[:, 1 * n_lanes:2 * n_lanes]                   # dy=1
        p2 = p[:, 2 * n_lanes:3 * n_lanes]                   # dy=2
        acc = (jnp.dot(down, p0, preferred_element_type=f32) + p1
               + jnp.dot(up, p2, preferred_element_type=f32))  # (H, W*Cout)
        acc = acc + b_ref[...]                               # conv bias

        # GroupNorm: per-group stats via lane aggregation matmul (f32).
        s1 = jnp.sum(acc, axis=0, keepdims=True)             # (1, W*Cout)
        s2 = jnp.sum(acc * acc, axis=0, keepdims=True)
        mean = jnp.dot(s1, gm, preferred_element_type=f32) * inv_n
        ex2 = jnp.dot(s2, gm, preferred_element_type=f32) * inv_n
        var = jnp.maximum(ex2 - mean * mean, 0.0)            # clamp >= 0
        rstd = jax.lax.rsqrt(var + eps)
        y = (acc - mean) * (rstd * gamma_ref[...]) + beta_ref[...]
        return jnp.maximum(y, 0.0)                           # ReLU

    x = x_ref[0].astype(f32)                                 # (H, W*Cin)
    y = cbr(x, w1_ref, b1_ref, g1_ref, be1_ref)              # stays in VMEM
    y = cbr(y, w2_ref, b2_ref, g2_ref, be2_ref)
    o_ref[0] = y.astype(o_ref.dtype)                         # lane-dense store


# ---------------------------------------------------------------------------
# Weight transform: 3x3 HWIO conv -> row-Toeplitz matrix (W*Cin, 3*W*Cout)
# Wcat[w_in*Cin+ci, dy*W*Cout + w_out*Cout + co] = w[dy, w_in-w_out+1, ci, co]
# (zero when the horizontal tap falls outside the kernel -> implicit W pad).
# ---------------------------------------------------------------------------
def conv3x3_to_row_toeplitz(w3, W):
    kh, kw, cin, cout = w3.shape
    w_in = jnp.arange(W)[:, None]
    w_out = jnp.arange(W)[None, :]
    dx = w_in - w_out + 1                                    # (W, W)
    valid = (dx >= 0) & (dx < kw)
    dxc = jnp.clip(dx, 0, kw - 1)
    sel = w3[:, dxc, :, :]                                   # (kh, W, W, cin, cout)
    sel = jnp.where(valid[None, :, :, None, None], sel, 0.0)
    sel = jnp.transpose(sel, (1, 3, 0, 2, 4))                # (W, cin, kh, W, cout)
    return sel.reshape(W * cin, kh * W * cout)


# ---------------------------------------------------------------------------
# Glue (pure layout shuffle, stays in XLA): unSubpixelPool + concat
# ---------------------------------------------------------------------------
def un_subpixel_pool(x_nchw):
    # x: (B, 2*in_ch, H, W) -> (B, in_ch//2, 2H, 2W)
    B, C, H, W = x_nchw.shape
    oc = C // 4
    g0 = x_nchw[:, 0 * oc:1 * oc]
    g1 = x_nchw[:, 1 * oc:2 * oc]
    g2 = x_nchw[:, 2 * oc:3 * oc]
    g3 = x_nchw[:, 3 * oc:4 * oc]
    top = jnp.stack([g0, g1], axis=-1)          # even output rows
    bot = jnp.stack([g2, g3], axis=-1)          # odd output rows
    out = jnp.stack([top, bot], axis=3)         # (B, oc, H, 2, W, 2)
    return out.reshape(B, oc, 2 * H, 2 * W)


@functools.partial(jax.jit, static_argnames=("num_groups",))
def polyoutdecblock_forward(x1, x2, params, num_groups=8):
    """x1: (B, 2*in_ch, H, W) NCHW, x2: (B, in_ch//2, 2H, 2W) NCHW."""
    up = un_subpixel_pool(x1)                       # (B, in_ch//2, 2H, 2W)
    x = jnp.concatenate([x2, up], axis=1)           # (B, in_ch, 2H, 2W)
    B, Cin, H, W = x.shape
    Cout = params["w1"].shape[-1]
    cpg = Cout // num_groups
    n_lanes = W * Cout

    # Lane-packed NHWC activations: (B, H, W*Cin).
    x_pack = jnp.transpose(x, (0, 2, 3, 1)).reshape(B, H, W * Cin)

    # Conv weights -> bf16 row-Toeplitz matrices (MXU operands).
    w1 = conv3x3_to_row_toeplitz(params["w1"], W).astype(jnp.bfloat16)
    w2 = conv3x3_to_row_toeplitz(params["w2"], W).astype(jnp.bfloat16)

    def lanes(v):  # per-channel vector -> (1, W*Cout) lane layout w*Cout + c
        return jnp.tile(v.astype(jnp.float32), W).reshape(1, n_lanes)

    b1, g1, be1 = lanes(params["b1"]), lanes(params["g1"]), lanes(params["be1"])
    b2, g2, be2 = lanes(params["b2"]), lanes(params["g2"]), lanes(params["be2"])

    # 0/1 lane-group aggregation matrix for GroupNorm stats.
    gid = jnp.arange(Cout) // cpg
    lane_gid = jnp.tile(gid, W)
    gmat = (lane_gid[:, None] == lane_gid[None, :]).astype(jnp.float32)

    kernel = functools.partial(
        _fused_cbr2_kernel, H=H, n_lanes=n_lanes,
        inv_n=1.0 / float(H * W * cpg), eps=1e-5)

    rep = lambda i: (0, 0)  # weights/params resident across grid steps
    out = pl.pallas_call(
        kernel,
        out_shape=jax.ShapeDtypeStruct((B, H, n_lanes), x.dtype),
        grid=(B,),
        in_specs=[
            pl.BlockSpec((1, H, W * Cin), lambda i: (i, 0, 0)),
            pl.BlockSpec(w1.shape, rep),
            pl.BlockSpec(b1.shape, rep),
            pl.BlockSpec(g1.shape, rep),
            pl.BlockSpec(be1.shape, rep),
            pl.BlockSpec(w2.shape, rep),
            pl.BlockSpec(b2.shape, rep),
            pl.BlockSpec(g2.shape, rep),
            pl.BlockSpec(be2.shape, rep),
            pl.BlockSpec(gmat.shape, rep),
        ],
        out_specs=pl.BlockSpec((1, H, n_lanes), lambda i: (i, 0, 0)),
        compiler_params=pltpu.CompilerParams(
            dimension_semantics=("parallel",)),   # 2-way shard on v7x megacore
    )(x_pack, w1, b1, g1, be1, w2, b2, g2, be2, gmat)

    # (B, H, W*Cout) -> (B, Cout, H, W)  (undo lane packing in the wrapper)
    y = out.reshape(B, H, W, Cout)
    return jnp.transpose(y, (0, 3, 1, 2))


# ---------------------------------------------------------------------------
# Pure-JAX f32 reference for validation
# ---------------------------------------------------------------------------
def _cbr_ref(x_nhwc, w, b, gamma, beta, num_groups=8):
    y = jax.lax.conv_general_dilated(
        x_nhwc, w, (1, 1), "SAME",
        dimension_numbers=("NHWC", "HWIO", "NHWC")) + b.reshape(1, 1, 1, -1)
    B, H, W, C = y.shape
    yg = y.reshape(B, H * W, num_groups, C // num_groups)
    mean = jnp.mean(yg, axis=(1, 3), keepdims=True)
    var = jnp.mean((yg - mean) ** 2, axis=(1, 3), keepdims=True)
    yn = ((yg - mean) / jnp.sqrt(var + 1e-5)).reshape(B, H, W, C)
    return jnp.maximum(yn * gamma.reshape(1, 1, 1, -1)
                       + beta.reshape(1, 1, 1, -1), 0.0)


def _forward_ref(x1, x2, params):
    up = un_subpixel_pool(x1)
    x = jnp.concatenate([x2, up], axis=1)
    x = jnp.transpose(x, (0, 2, 3, 1))
    y = _cbr_ref(x, params["w1"], params["b1"], params["g1"], params["be1"])
    y = _cbr_ref(y, params["w2"], params["b2"], params["g2"], params["be2"])
    return jnp.transpose(y, (0, 3, 1, 2))


if __name__ == "__main__":
    # polyoutdecblock(in_ch=8, out_ch=8):
    #   x1: (B, 2*in_ch, H, W), x2: (B, in_ch//2, 2H, 2W)
    B, in_ch, out_ch, H, W = 2, 8, 8, 8, 8

    key = jax.random.PRNGKey(0)
    ks = jax.random.split(key, 10)
    x1 = jax.random.normal(ks[0], (B, 2 * in_ch, H, W), jnp.float32)
    x2 = jax.random.normal(ks[1], (B, in_ch // 2, 2 * H, 2 * W), jnp.float32)

    params = {
        "w1": 0.1 * jax.random.normal(ks[2], (3, 3, in_ch, out_ch), jnp.float32),
        "b1": 0.1 * jax.random.normal(ks[3], (out_ch,), jnp.float32),
        "g1": 1.0 + 0.1 * jax.random.normal(ks[4], (out_ch,), jnp.float32),
        "be1": 0.1 * jax.random.normal(ks[5], (out_ch,), jnp.float32),
        "w2": 0.1 * jax.random.normal(ks[6], (3, 3, out_ch, out_ch), jnp.float32),
        "b2": 0.1 * jax.random.normal(ks[7], (out_ch,), jnp.float32),
        "g2": 1.0 + 0.1 * jax.random.normal(ks[8], (out_ch,), jnp.float32),
        "be2": 0.1 * jax.random.normal(ks[9], (out_ch,), jnp.float32),
    }

    out = jax.block_until_ready(polyoutdecblock_forward(x1, x2, params))
    ref = jax.block_until_ready(_forward_ref(x1, x2, params))

    assert out.shape == (B, out_ch, 2 * H, 2 * W), out.shape
    # Tolerance accounts for bf16 MXU operands (f32 accumulate) through two
    # conv + GroupNorm stages vs. the pure-f32 reference.
    assert jnp.allclose(out, ref, atol=5e-2, rtol=5e-2), float(
        jnp.max(jnp.abs(out - ref)))
    print("KERNEL_OK")
</pallas_src>

<mosaic_0001>
module attributes {stable_mosaic.version = 11 : i64} {
  func.func @_fused_cbr2_kernel(%arg0: i32, %arg1: memref<1x16x128xf32, #tpu.memory_space<vmem>>, %arg2: memref<128x384xbf16, #tpu.memory_space<vmem>>, %arg3: memref<1x128xf32, #tpu.memory_space<vmem>>, %arg4: memref<1x128xf32, #tpu.memory_space<vmem>>, %arg5: memref<1x128xf32, #tpu.memory_space<vmem>>, %arg6: memref<128x384xbf16, #tpu.memory_space<vmem>>, %arg7: memref<1x128xf32, #tpu.memory_space<vmem>>, %arg8: memref<1x128xf32, #tpu.memory_space<vmem>>, %arg9: memref<1x128xf32, #tpu.memory_space<vmem>>, %arg10: memref<128x128xf32, #tpu.memory_space<vmem>>, %arg11: memref<1x16x128xf32, #tpu.memory_space<vmem>>) attributes {dimension_semantics = [#tpu.dimension_semantics<parallel>], iteration_bounds = array<i64: 2>, scalar_prefetch = 0 : i64, scratch_operands = 0 : i64, tpu.core_type = #tpu.core_type<tc>, window_params = [{transform_indices = @transform_0, window_bounds = array<i64: 1, 16, 128>}, {pipeline_mode = #tpu.pipeline_mode<synchronous>, transform_indices = @transform_1, window_bounds = array<i64: 128, 384>}, {pipeline_mode = #tpu.pipeline_mode<synchronous>, transform_indices = @transform_2, window_bounds = array<i64: 1, 128>}, {pipeline_mode = #tpu.pipeline_mode<synchronous>, transform_indices = @transform_3, window_bounds = array<i64: 1, 128>}, {pipeline_mode = #tpu.pipeline_mode<synchronous>, transform_indices = @transform_4, window_bounds = array<i64: 1, 128>}, {pipeline_mode = #tpu.pipeline_mode<synchronous>, transform_indices = @transform_5, window_bounds = array<i64: 128, 384>}, {pipeline_mode = #tpu.pipeline_mode<synchronous>, transform_indices = @transform_6, window_bounds = array<i64: 1, 128>}, {pipeline_mode = #tpu.pipeline_mode<synchronous>, transform_indices = @transform_7, window_bounds = array<i64: 1, 128>}, {pipeline_mode = #tpu.pipeline_mode<synchronous>, transform_indices = @transform_8, window_bounds = array<i64: 1, 128>}, {pipeline_mode = #tpu.pipeline_mode<synchronous>, transform_indices = @transform_9, window_bounds = array<i64: 128, 128>}, {transform_indices = @transform_10, window_bounds = array<i64: 1, 16, 128>}]} {
    %0 = tpu.iota {dimensions = array<i32: 0>} : vector<16x16xi32>
    %1 = tpu.iota {dimensions = array<i32: 1>} : vector<16x16xi32>
    %c1_i32 = arith.constant 1 : i32
    %2 = vector.broadcast %c1_i32 : i32 to vector<16x16xi32>
    %3 = arith.subi %0, %2 : vector<16x16xi32>
    %4 = arith.cmpi eq, %1, %3 : vector<16x16xi32>
    %5 = arith.extui %4 : vector<16x16xi1> to vector<16x16xi32>
    %6 = arith.sitofp %5 : vector<16x16xi32> to vector<16x16xf32>
    %c1_i32_0 = arith.constant 1 : i32
    %7 = vector.broadcast %c1_i32_0 : i32 to vector<16x16xi32>
    %8 = arith.addi %0, %7 : vector<16x16xi32>
    %9 = arith.cmpi eq, %1, %8 : vector<16x16xi32>
    %10 = arith.extui %9 : vector<16x16xi1> to vector<16x16xi32>
    %11 = arith.sitofp %10 : vector<16x16xi32> to vector<16x16xf32>
    %c0 = arith.constant 0 : index
    %c0_1 = arith.constant 0 : index
    %12 = vector.load %arg10[%c0, %c0_1] : memref<128x128xf32, #tpu.memory_space<vmem>>, vector<128x128xf32>
    %c0_2 = arith.constant 0 : index
    %c0_3 = arith.constant 0 : index
    %c0_4 = arith.constant 0 : index
    %13 = vector.load %arg1[%c0_2, %c0_3, %c0_4] : memref<1x16x128xf32, #tpu.memory_space<vmem>>, vector<1x16x128xf32>
    %14 = vector.shape_cast %13 : vector<1x16x128xf32> to vector<16x128xf32>
    %15 = arith.truncf %14 : vector<16x128xf32> to vector<16x128xbf16>
    %c0_5 = arith.constant 0 : index
    %c0_6 = arith.constant 0 : index
    %16 = vector.load %arg2[%c0_5, %c0_6] : memref<128x384xbf16, #tpu.memory_space<vmem>>, vector<128x384xbf16>
    %cst = arith.constant dense<0.000000e+00> : vector<16x384xf32>
    %17 = tpu.matmul %15, %16, %cst {dimension_numbers = #tpu.dot_dimension_numbers<[1], [0], [0], [1], [0, 0, 1, 1], [], []>} : vector<16x128xbf16>, vector<128x384xbf16>, vector<16x384xf32> -> vector<16x384xf32>
    %18 = vector.extract_strided_slice %17 {offsets = [0, 0], sizes = [16, 128], strides = [1, 1]} : vector<16x384xf32> to vector<16x128xf32>
    %19 = vector.extract_strided_slice %17 {offsets = [0, 128], sizes = [16, 128], strides = [1, 1]} : vector<16x384xf32> to vector<16x128xf32>
    %20 = vector.extract_strided_slice %17 {offsets = [0, 256], sizes = [16, 128], strides = [1, 1]} : vector<16x384xf32> to vector<16x128xf32>
    %cst_7 = arith.constant dense<0.000000e+00> : vector<16x128xf32>
    %21 = tpu.matmul %6, %18, %cst_7 {dimension_numbers = #tpu.dot_dimension_numbers<[1], [0], [0], [1], [0, 0, 1, 1], [], []>} : vector<16x16xf32>, vector<16x128xf32>, vector<16x128xf32> -> vector<16x128xf32>
    %22 = arith.addf %21, %19 : vector<16x128xf32>
    %cst_8 = arith.constant dense<0.000000e+00> : vector<16x128xf32>
    %23 = tpu.matmul %11, %20, %cst_8 {dimension_numbers = #tpu.dot_dimension_numbers<[1], [0], [0], [1], [0, 0, 1, 1], [], []>} : vector<16x16xf32>, vector<16x128xf32>, vector<16x128xf32> -> vector<16x128xf32>
    %24 = arith.addf %22, %23 : vector<16x128xf32>
    %c0_9 = arith.constant 0 : index
    %c0_10 = arith.constant 0 : index
    %25 = vector.load %arg3[%c0_9, %c0_10] : memref<1x128xf32, #tpu.memory_space<vmem>>, vector<1x128xf32>
    %26 = vector.broadcast %25 : vector<1x128xf32> to vector<16x128xf32>
    %27 = arith.addf %24, %26 : vector<16x128xf32>
    %cst_11 = arith.constant dense<0.000000e+00> : vector<128xf32>
    %28 = vector.multi_reduction <add>, %27, %cst_11 [0] : vector<16x128xf32> to vector<128xf32>
    %29 = vector.shape_cast %28 : vector<128xf32> to vector<1x128xf32>
    %30 = arith.mulf %27, %27 : vector<16x128xf32>
    %cst_12 = arith.constant dense<0.000000e+00> : vector<128xf32>
    %31 = vector.multi_reduction <add>, %30, %cst_12 [0] : vector<16x128xf32> to vector<128xf32>
    %32 = vector.shape_cast %31 : vector<128xf32> to vector<1x128xf32>
    %cst_13 = arith.constant dense<0.000000e+00> : vector<1x128xf32>
    %33 = tpu.matmul %29, %12, %cst_13 {dimension_numbers = #tpu.dot_dimension_numbers<[1], [0], [0], [1], [0, 0, 1, 1], [], []>} : vector<1x128xf32>, vector<128x128xf32>, vector<1x128xf32> -> vector<1x128xf32>
    %cst_14 = arith.constant 3.906250e-03 : f32
    %34 = vector.broadcast %cst_14 : f32 to vector<1x128xf32>
    %35 = arith.mulf %33, %34 : vector<1x128xf32>
    %cst_15 = arith.constant dense<0.000000e+00> : vector<1x128xf32>
    %36 = tpu.matmul %32, %12, %cst_15 {dimension_numbers = #tpu.dot_dimension_numbers<[1], [0], [0], [1], [0, 0, 1, 1], [], []>} : vector<1x128xf32>, vector<128x128xf32>, vector<1x128xf32> -> vector<1x128xf32>
    %cst_16 = arith.constant 3.906250e-03 : f32
    %37 = vector.broadcast %cst_16 : f32 to vector<1x128xf32>
    %38 = arith.mulf %36, %37 : vector<1x128xf32>
    %39 = arith.mulf %35, %35 : vector<1x128xf32>
    %40 = arith.subf %38, %39 : vector<1x128xf32>
    %cst_17 = arith.constant 0.000000e+00 : f32
    %41 = vector.broadcast %cst_17 : f32 to vector<1x128xf32>
    %42 = arith.maximumf %40, %41 : vector<1x128xf32>
    %cst_18 = arith.constant 9.99999974E-6 : f32
    %43 = vector.broadcast %cst_18 : f32 to vector<1x128xf32>
    %44 = arith.addf %42, %43 : vector<1x128xf32>
    %45 = math.rsqrt %44 : vector<1x128xf32>
    %46 = vector.broadcast %35 : vector<1x128xf32> to vector<16x128xf32>
    %47 = arith.subf %27, %46 : vector<16x128xf32>
    %c0_19 = arith.constant 0 : index
    %c0_20 = arith.constant 0 : index
    %48 = vector.load %arg4[%c0_19, %c0_20] : memref<1x128xf32, #tpu.memory_space<vmem>>, vector<1x128xf32>
    %49 = arith.mulf %45, %48 : vector<1x128xf32>
    %50 = vector.broadcast %49 : vector<1x128xf32> to vector<16x128xf32>
    %51 = arith.mulf %47, %50 : vector<16x128xf32>
    %c0_21 = arith.constant 0 : index
    %c0_22 = arith.constant 0 : index
    %52 = vector.load %arg5[%c0_21, %c0_22] : memref<1x128xf32, #tpu.memory_space<vmem>>, vector<1x128xf32>
    %53 = vector.broadcast %52 : vector<1x128xf32> to vector<16x128xf32>
    %54 = arith.addf %51, %53 : vector<16x128xf32>
    %cst_23 = arith.constant 0.000000e+00 : f32
    %55 = vector.broadcast %cst_23 : f32 to vector<16x128xf32>
    %56 = arith.maximumf %54, %55 : vector<16x128xf32>
    %57 = arith.truncf %56 : vector<16x128xf32> to vector<16x128xbf16>
    %c0_24 = arith.constant 0 : index
    %c0_25 = arith.constant 0 : index
    %58 = vector.load %arg6[%c0_24, %c0_25] : memref<128x384xbf16, #tpu.memory_space<vmem>>, vector<128x384xbf16>
    %cst_26 = arith.constant dense<0.000000e+00> : vector<16x384xf32>
    %59 = tpu.matmul %57, %58, %cst_26 {dimension_numbers = #tpu.dot_dimension_numbers<[1], [0], [0], [1], [0, 0, 1, 1], [], []>} : vector<16x128xbf16>, vector<128x384xbf16>, vector<16x384xf32> -> vector<16x384xf32>
    %60 = vector.extract_strided_slice %59 {offsets = [0, 0], sizes = [16, 128], strides = [1, 1]} : vector<16x384xf32> to vector<16x128xf32>
    %61 = vector.extract_strided_slice %59 {offsets = [0, 128], sizes = [16, 128], strides = [1, 1]} : vector<16x384xf32> to vector<16x128xf32>
    %62 = vector.extract_strided_slice %59 {offsets = [0, 256], sizes = [16, 128], strides = [1, 1]} : vector<16x384xf32> to vector<16x128xf32>
    %cst_27 = arith.constant dense<0.000000e+00> : vector<16x128xf32>
    %63 = tpu.matmul %6, %60, %cst_27 {dimension_numbers = #tpu.dot_dimension_numbers<[1], [0], [0], [1], [0, 0, 1, 1], [], []>} : vector<16x16xf32>, vector<16x128xf32>, vector<16x128xf32> -> vector<16x128xf32>
    %64 = arith.addf %63, %61 : vector<16x128xf32>
    %cst_28 = arith.constant dense<0.000000e+00> : vector<16x128xf32>
    %65 = tpu.matmul %11, %62, %cst_28 {dimension_numbers = #tpu.dot_dimension_numbers<[1], [0], [0], [1], [0, 0, 1, 1], [], []>} : vector<16x16xf32>, vector<16x128xf32>, vector<16x128xf32> -> vector<16x128xf32>
    %66 = arith.addf %64, %65 : vector<16x128xf32>
    %c0_29 = arith.constant 0 : index
    %c0_30 = arith.constant 0 : index
    %67 = vector.load %arg7[%c0_29, %c0_30] : memref<1x128xf32, #tpu.memory_space<vmem>>, vector<1x128xf32>
    %68 = vector.broadcast %67 : vector<1x128xf32> to vector<16x128xf32>
    %69 = arith.addf %66, %68 : vector<16x128xf32>
    %cst_31 = arith.constant dense<0.000000e+00> : vector<128xf32>
    %70 = vector.multi_reduction <add>, %69, %cst_31 [0] : vector<16x128xf32> to vector<128xf32>
    %71 = vector.shape_cast %70 : vector<128xf32> to vector<1x128xf32>
    %72 = arith.mulf %69, %69 : vector<16x128xf32>
    %cst_32 = arith.constant dense<0.000000e+00> : vector<128xf32>
    %73 = vector.multi_reduction <add>, %72, %cst_32 [0] : vector<16x128xf32> to vector<128xf32>
    %74 = vector.shape_cast %73 : vector<128xf32> to vector<1x128xf32>
    %cst_33 = arith.constant dense<0.000000e+00> : vector<1x128xf32>
    %75 = tpu.matmul %71, %12, %cst_33 {dimension_numbers = #tpu.dot_dimension_numbers<[1], [0], [0], [1], [0, 0, 1, 1], [], []>} : vector<1x128xf32>, vector<128x128xf32>, vector<1x128xf32> -> vector<1x128xf32>
    %cst_34 = arith.constant 3.906250e-03 : f32
    %76 = vector.broadcast %cst_34 : f32 to vector<1x128xf32>
    %77 = arith.mulf %75, %76 : vector<1x128xf32>
    %cst_35 = arith.constant dense<0.000000e+00> : vector<1x128xf32>
    %78 = tpu.matmul %74, %12, %cst_35 {dimension_numbers = #tpu.dot_dimension_numbers<[1], [0], [0], [1], [0, 0, 1, 1], [], []>} : vector<1x128xf32>, vector<128x128xf32>, vector<1x128xf32> -> vector<1x128xf32>
    %cst_36 = arith.constant 3.906250e-03 : f32
    %79 = vector.broadcast %cst_36 : f32 to vector<1x128xf32>
    %80 = arith.mulf %78, %79 : vector<1x128xf32>
    %81 = arith.mulf %77, %77 : vector<1x128xf32>
    %82 = arith.subf %80, %81 : vector<1x128xf32>
    %cst_37 = arith.constant 0.000000e+00 : f32
    %83 = vector.broadcast %cst_37 : f32 to vector<1x128xf32>
    %84 = arith.maximumf %82, %83 : vector<1x128xf32>
    %cst_38 = arith.constant 9.99999974E-6 : f32
    %85 = vector.broadcast %cst_38 : f32 to vector<1x128xf32>
    %86 = arith.addf %84, %85 : vector<1x128xf32>
    %87 = math.rsqrt %86 : vector<1x128xf32>
    %88 = vector.broadcast %77 : vector<1x128xf32> to vector<16x128xf32>
    %89 = arith.subf %69, %88 : vector<16x128xf32>
    %c0_39 = arith.constant 0 : index
    %c0_40 = arith.constant 0 : index
    %90 = vector.load %arg8[%c0_39, %c0_40] : memref<1x128xf32, #tpu.memory_space<vmem>>, vector<1x128xf32>
    %91 = arith.mulf %87, %90 : vector<1x128xf32>
    %92 = vector.broadcast %91 : vector<1x128xf32> to vector<16x128xf32>
    %93 = arith.mulf %89, %92 : vector<16x128xf32>
    %c0_41 = arith.constant 0 : index
    %c0_42 = arith.constant 0 : index
    %94 = vector.load %arg9[%c0_41, %c0_42] : memref<1x128xf32, #tpu.memory_space<vmem>>, vector<1x128xf32>
    %95 = vector.broadcast %94 : vector<1x128xf32> to vector<16x128xf32>
    %96 = arith.addf %93, %95 : vector<16x128xf32>
    %cst_43 = arith.constant 0.000000e+00 : f32
    %97 = vector.broadcast %cst_43 : f32 to vector<16x128xf32>
    %98 = arith.maximumf %96, %97 : vector<16x128xf32>
    %c0_44 = arith.constant 0 : index
    %c0_45 = arith.constant 0 : index
    %c0_46 = arith.constant 0 : index
    %99 = vector.load %arg11[%c0_44, %c0_45, %c0_46] : memref<1x16x128xf32, #tpu.memory_space<vmem>>, vector<1x16x128xf32>
    %100 = vector.shape_cast %99 : vector<1x16x128xf32> to vector<16x128xf32>
    %101 = vector.shape_cast %98 : vector<16x128xf32> to vector<1x16x128xf32>
    tpu.vector_store %arg11[%c0_44, %c0_45, %c0_46], %101 {strides = array<i32>} : memref<1x16x128xf32, #tpu.memory_space<vmem>>, vector<1x16x128xf32>,
    return
  }
  func.func @transform_0(%arg0: i32) -> (i32, i32, i32) {
    %c0_i32 = arith.constant 0 : i32
    %c0_i32_0 = arith.constant 0 : i32
    %c0_i32_1 = arith.constant 0 : i32
    return %arg0, %c0_i32, %c0_i32_0 : i32, i32, i32
  }
  func.func @transform_1(%arg0: i32) -> (i32, i32) {
    %c0_i32 = arith.constant 0 : i32
    %c0_i32_0 = arith.constant 0 : i32
    %c0_i32_1 = arith.constant 0 : i32
    return %c0_i32, %c0_i32_0 : i32, i32
  }
  func.func @transform_2(%arg0: i32) -> (i32, i32) {
    %c0_i32 = arith.constant 0 : i32
    %c0_i32_0 = arith.constant 0 : i32
    %c0_i32_1 = arith.constant 0 : i32
    return %c0_i32, %c0_i32_0 : i32, i32
  }
  func.func @transform_3(%arg0: i32) -> (i32, i32) {
    %c0_i32 = arith.constant 0 : i32
    %c0_i32_0 = arith.constant 0 : i32
    %c0_i32_1 = arith.constant 0 : i32
    return %c0_i32, %c0_i32_0 : i32, i32
  }
  func.func @transform_4(%arg0: i32) -> (i32, i32) {
    %c0_i32 = arith.constant 0 : i32
    %c0_i32_0 = arith.constant 0 : i32
    %c0_i32_1 = arith.constant 0 : i32
    return %c0_i32, %c0_i32_0 : i32, i32
  }
  func.func @transform_5(%arg0: i32) -> (i32, i32) {
    %c0_i32 = arith.constant 0 : i32
    %c0_i32_0 = arith.constant 0 : i32
    %c0_i32_1 = arith.constant 0 : i32
    return %c0_i32, %c0_i32_0 : i32, i32
  }
  func.func @transform_6(%arg0: i32) -> (i32, i32) {
    %c0_i32 = arith.constant 0 : i32
    %c0_i32_0 = arith.constant 0 : i32
    %c0_i32_1 = arith.constant 0 : i32
    return %c0_i32, %c0_i32_0 : i32, i32
  }
  func.func @transform_7(%arg0: i32) -> (i32, i32) {
    %c0_i32 = arith.constant 0 : i32
    %c0_i32_0 = arith.constant 0 : i32
    %c0_i32_1 = arith.constant 0 : i32
    return %c0_i32, %c0_i32_0 : i32, i32
  }
  func.func @transform_8(%arg0: i32) -> (i32, i32) {
    %c0_i32 = arith.constant 0 : i32
    %c0_i32_0 = arith.constant 0 : i32
    %c0_i32_1 = arith.constant 0 : i32
    return %c0_i32, %c0_i32_0 : i32, i32
  }
  func.func @transform_9(%arg0: i32) -> (i32, i32) {
    %c0_i32 = arith.constant 0 : i32
    %c0_i32_0 = arith.constant 0 : i32
    %c0_i32_1 = arith.constant 0 : i32
    return %c0_i32, %c0_i32_0 : i32, i32
  }
  func.func @transform_10(%arg0: i32) -> (i32, i32, i32) {
    %c0_i32 = arith.constant 0 : i32
    %c0_i32_0 = arith.constant 0 : i32
    %c0_i32_1 = arith.constant 0 : i32
    return %arg0, %c0_i32, %c0_i32_0 : i32, i32, i32
  }
}

</mosaic_0001>

<llo_original>
// kernel: eq.8
$region0: #{eq.8}
  %s0 = inlined_call_operand.vmem [shape: s32[16,8], index: 0, kind: input, shape index: {}]
  %s1 = inlined_call_operand.vmem [shape: s32[128], index: 1, kind: output, shape index: {}]
  $region1: #{eq.8} parent=0
    #allocation0 [shape = 'u8[4096]{0}', space=vmem, size = 0x1000, scoped, tag = 'scoped mem for output reshape']
    %v2 = vld [vmem:[%s0] sm:$0x1]
    %vm3 = vcmask 64512
    %4 = vst.msk [vmem:[#allocation0] sm:$0x1] %vm3, %v2
    %s5 = scalar_lea.vmem %s0, 15
    %v6 = vld [vmem:[%s5] sm:$0x1]
    %7 = vrot.lane.b32.xlu0 %v6, 120
    %v8 = vpop.permute.xlu0 %7
    %vm9 = vcmask 1048512
    %10 = vst.msk [vmem:[#allocation0] sm:$0x1] %vm9, %v8
    %s11 = scalar_lea.vmem %s0, 14
    %v12 = vld [vmem:[%s11] sm:$0x1]
    %13 = vrot.lane.b32.xlu0 %v12, 112
    %v14 = vpop.permute.xlu0 %13
    %vm15 = vcmask 982912
    %16 = vst.msk [vmem:[#allocation0] sm:$0x1] %vm15, %v14
    %s17 = scalar_lea.vmem %s0, 13
    %v18 = vld [vmem:[%s17] sm:$0x1]
    %19 = vrot.lane.b32.xlu0 %v18, 104
    %v20 = vpop.permute.xlu0 %19
    %vm21 = vcmask 917312
    %22 = vst.msk [vmem:[#allocation0] sm:$0x1] %vm21, %v20
    %s23 = scalar_lea.vmem %s0, 12
    %v24 = vld [vmem:[%s23] sm:$0x1]
    %25 = vrot.lane.b32.xlu0 %v24, 96
    %v26 = vpop.permute.xlu0 %25
    %vm27 = vcmask 851712
    %28 = vst.msk [vmem:[#allocation0] sm:$0x1] %vm27, %v26
    %s29 = scalar_lea.vmem %s0, 11
    %v30 = vld [vmem:[%s29] sm:$0x1]
    %31 = vrot.lane.b32.xlu0 %v30, 88
    %v32 = vpop.permute.xlu0 %31
    %vm33 = vcmask 786112
    %34 = vst.msk [vmem:[#allocation0] sm:$0x1] %vm33, %v32
    %s35 = scalar_lea.vmem %s0, 10
    %v36 = vld [vmem:[%s35] sm:$0x1]
    %37 = vrot.lane.b32.xlu0 %v36, 80
    %v38 = vpop.permute.xlu0 %37
    %vm39 = vcmask 720512
    %40 = vst.msk [vmem:[#allocation0] sm:$0x1] %vm39, %v38
    %s41 = scalar_lea.vmem %s0, 9
    %v42 = vld [vmem:[%s41] sm:$0x1]
    %43 = vrot.lane.b32.xlu0 %v42, 72
    %v44 = vpop.permute.xlu0 %43
    %vm45 = vcmask 654912
    %46 = vst.msk [vmem:[#allocation0] sm:$0x1] %vm45, %v44
    %s47 = scalar_lea.vmem %s0, 8
    %v48 = vld [vmem:[%s47] sm:$0x1]
    %49 = vrot.lane.b32.xlu0 %v48, 64
    %v50 = vpop.permute.xlu0 %49
    %vm51 = vcmask 589312
    %52 = vst.msk [vmem:[#allocation0] sm:$0x1] %vm51, %v50
    %s53 = scalar_lea.vmem %s0, 7
    %v54 = vld [vmem:[%s53] sm:$0x1]
    %55 = vrot.lane.b32.xlu0 %v54, 56
    %v56 = vpop.permute.xlu0 %55
    %vm57 = vcmask 523712
    %58 = vst.msk [vmem:[#allocation0] sm:$0x1] %vm57, %v56
    %s59 = scalar_lea.vmem %s0, 6
    %v60 = vld [vmem:[%s59] sm:$0x1]
    %61 = vrot.lane.b32.xlu0 %v60, 48
    %v62 = vpop.permute.xlu0 %61
    %vm63 = vcmask 458112
    %64 = vst.msk [vmem:[#allocation0] sm:$0x1] %vm63, %v62
    %s65 = scalar_lea.vmem %s0, 5
    %v66 = vld [vmem:[%s65] sm:$0x1]
    %67 = vrot.lane.b32.xlu0 %v66, 40
    %v68 = vpop.permute.xlu0 %67
    %vm69 = vcmask 392512
    %70 = vst.msk [vmem:[#allocation0] sm:$0x1] %vm69, %v68
    %s71 = scalar_lea.vmem %s0, 4
    %v72 = vld [vmem:[%s71] sm:$0x1]
    %73 = vrot.lane.b32.xlu0 %v72, 32
    %v74 = vpop.permute.xlu0 %73
    %vm75 = vcmask 326912
    %76 = vst.msk [vmem:[#allocation0] sm:$0x1] %vm75, %v74
    %s77 = scalar_lea.vmem %s0, 3
    %v78 = vld [vmem:[%s77] sm:$0x1]
    %79 = vrot.lane.b32.xlu0 %v78, 24
    %v80 = vpop.permute.xlu0 %79
    %vm81 = vcmask 261312
    %82 = vst.msk [vmem:[#allocation0] sm:$0x1] %vm81, %v80
    %s83 = scalar_lea.vmem %s0, 2
    %v84 = vld [vmem:[%s83] sm:$0x1]
    %85 = vrot.lane.b32.xlu0 %v84, 16
    %v86 = vpop.permute.xlu0 %85
    %vm87 = vcmask 195712
    %88 = vst.msk [vmem:[#allocation0] sm:$0x1] %vm87, %v86
    %s89 = scalar_lea.vmem %s0, 1
    %v90 = vld [vmem:[%s89] sm:$0x1]
    %91 = vrot.lane.b32.xlu0 %v90, 8
    %v92 = vpop.permute.xlu0 %91
    %vm93 = vcmask 130112
    %94 = vst.msk [vmem:[#allocation0] sm:$0x1] %vm93, %v92
    %s96 = sshllo.u32 0, 1
    %v98 = vld [vmem:[#allocation0] sm:%s96]
    %s99 = sshllo.u32 0, 1
    %100 = vst [vmem:[%s1] sm:%s99] %v98

// kernel: tile.39
$region0: #{tile.39}
  #allocation0 [shape = 's32[1]{0}', space=sflag, size = 0x4, scoped, tag = 'scoped memory for tile.39']
  %s0 = inlined_call_operand.vmem [shape: f32[8], index: 0, kind: input, shape index: {}]
  %s1 = inlined_call_operand.vmem [shape: f32[16,8], index: 1, kind: output, shape index: {}]
  // Predicated region
  $region2: #{tile.39} parent=0 // pred_check
    _
  $region3: #{tile.39} parent=0 // pred_check_branch
    %3 = sbr.rel (0) target = $region5
  $region4: #{tile.39} parent=0 // pred_region
    _
  $region5: #{tile.39} parent=0 // pred_fallthru
    _
  %v4 = vld [vmem:[%s0] ss:$0 sm:$0xff]
  %5 = vst [vmem:[%s1] sm:$0xff] %v4
  %s6 = scalar_lea.vmem %s1, 8
  %7 = vst [vmem:[%s6] sm:$0xff] %v4

// kernel: tile.40
$region0: #{tile.40}
  %s0 = inlined_call_operand.vmem [shape: f32[16,8], index: 0, kind: input, shape index: {}]
  %s1 = inlined_call_operand.vmem [shape: f32[1,128], index: 1, kind: output, shape index: {}]
  $region1: #{tile.40} parent=0
    #allocation0 [shape = 'u8[4096]{0}', space=vmem, size = 0x1000, scoped, tag = 'scoped mem for output reshape']
    %v2 = vld [vmem:[%s0] sm:$0x1]
    %vm3 = vcmask 64512
    %4 = vst.msk [vmem:[#allocation0] sm:$0x1] %vm3, %v2
    %s5 = scalar_lea.vmem %s0, 15
    %v6 = vld [vmem:[%s5] sm:$0x1]
    %7 = vrot.lane.b32.xlu0 %v6, 120
    %v8 = vpop.permute.xlu0 %7
    %vm9 = vcmask 1048512
    %10 = vst.msk [vmem:[#allocation0] sm:$0x1] %vm9, %v8
    %s11 = scalar_lea.vmem %s0, 14
    %v12 = vld [vmem:[%s11] sm:$0x1]
    %13 = vrot.lane.b32.xlu0 %v12, 112
    %v14 = vpop.permute.xlu0 %13
    %vm15 = vcmask 982912
    %16 = vst.msk [vmem:[#allocation0] sm:$0x1] %vm15, %v14
    %s17 = scalar_lea.vmem %s0, 13
    %v18 = vld [vmem:[%s17] sm:$0x1]
    %19 = vrot.lane.b32.xlu0 %v18, 104
    %v20 = vpop.permute.xlu0 %19
    %vm21 = vcmask 917312
    %22 = vst.msk [vmem:[#allocation0] sm:$0x1] %vm21, %v20
    %s23 = scalar_lea.vmem %s0, 12
    %v24 = vld [vmem:[%s23] sm:$0x1]
    %25 = vrot.lane.b32.xlu0 %v24, 96
    %v26 = vpop.permute.xlu0 %25
    %vm27 = vcmask 851712
    %28 = vst.msk [vmem:[#allocation0] sm:$0x1] %vm27, %v26
    %s29 = scalar_lea.vmem %s0, 11
    %v30 = vld [vmem:[%s29] sm:$0x1]
    %31 = vrot.lane.b32.xlu0 %v30, 88
    %v32 = vpop.permute.xlu0 %31
    %vm33 = vcmask 786112
    %34 = vst.msk [vmem:[#allocation0] sm:$0x1] %vm33, %v32
    %s35 = scalar_lea.vmem %s0, 10
    %v36 = vld [vmem:[%s35] sm:$0x1]
    %37 = vrot.lane.b32.xlu0 %v36, 80
    %v38 = vpop.permute.xlu0 %37
    %vm39 = vcmask 720512
    %40 = vst.msk [vmem:[#allocation0] sm:$0x1] %vm39, %v38
    %s41 = scalar_lea.vmem %s0, 9
    %v42 = vld [vmem:[%s41] sm:$0x1]
    %43 = vrot.lane.b32.xlu0 %v42, 72
    %v44 = vpop.permute.xlu0 %43
    %vm45 = vcmask 654912
    %46 = vst.msk [vmem:[#allocation0] sm:$0x1] %vm45, %v44
    %s47 = scalar_lea.vmem %s0, 8
    %v48 = vld [vmem:[%s47] sm:$0x1]
    %49 = vrot.lane.b32.xlu0 %v48, 64
    %v50 = vpop.permute.xlu0 %49
    %vm51 = vcmask 589312
    %52 = vst.msk [vmem:[#allocation0] sm:$0x1] %vm51, %v50
    %s53 = scalar_lea.vmem %s0, 7
    %v54 = vld [vmem:[%s53] sm:$0x1]
    %55 = vrot.lane.b32.xlu0 %v54, 56
    %v56 = vpop.permute.xlu0 %55
    %vm57 = vcmask 523712
    %58 = vst.msk [vmem:[#allocation0] sm:$0x1] %vm57, %v56
    %s59 = scalar_lea.vmem %s0, 6
    %v60 = vld [vmem:[%s59] sm:$0x1]
    %61 = vrot.lane.b32.xlu0 %v60, 48
    %v62 = vpop.permute.xlu0 %61
    %vm63 = vcmask 458112
    %64 = vst.msk [vmem:[#allocation0] sm:$0x1] %vm63, %v62
    %s65 = scalar_lea.vmem %s0, 5
    %v66 = vld [vmem:[%s65] sm:$0x1]
    %67 = vrot.lane.b32.xlu0 %v66, 40
    %v68 = vpop.permute.xlu0 %67
    %vm69 = vcmask 392512
    %70 = vst.msk [vmem:[#allocation0] sm:$0x1] %vm69, %v68
    %s71 = scalar_lea.vmem %s0, 4
    %v72 = vld [vmem:[%s71] sm:$0x1]
    %73 = vrot.lane.b32.xlu0 %v72, 32
    %v74 = vpop.permute.xlu0 %73
    %vm75 = vcmask 326912
    %76 = vst.msk [vmem:[#allocation0] sm:$0x1] %vm75, %v74
    %s77 = scalar_lea.vmem %s0, 3
    %v78 = vld [vmem:[%s77] sm:$0x1]
    %79 = vrot.lane.b32.xlu0 %v78, 24
    %v80 = vpop.permute.xlu0 %79
    %vm81 = vcmask 261312
    %82 = vst.msk [vmem:[#allocation0] sm:$0x1] %vm81, %v80
    %s83 = scalar_lea.vmem %s0, 2
    %v84 = vld [vmem:[%s83] sm:$0x1]
    %85 = vrot.lane.b32.xlu0 %v84, 16
    %v86 = vpop.permute.xlu0 %85
    %vm87 = vcmask 195712
    %88 = vst.msk [vmem:[#allocation0] sm:$0x1] %vm87, %v86
    %s89 = scalar_lea.vmem %s0, 1
    %v90 = vld [vmem:[%s89] sm:$0x1]
    %91 = vrot.lane.b32.xlu0 %v90, 8
    %v92 = vpop.permute.xlu0 %91
    %vm93 = vcmask 130112
    %94 = vst.msk [vmem:[#allocation0] sm:$0x1] %vm93, %v92
    %s96 = sshllo.u32 0, 1
    %v98 = vld [vmem:[#allocation0] sm:%s96]
    %s99 = sshllo.u32 0, 1
    %100 = vst [vmem:[%s1] sm:%s99] %v98

// kernel: polyoutdecblock_forward.1
$region0: #{polyoutdecblock_forward.1}
  #allocation0 [shape = 'u32[]', space=smem, size = 0x4, offset = 0x4, fixed_abs, tag = 'smem constant byte address 0x4 - core index']
  #allocation1 [shape = 'u32[144,128]{1,0:T(1,128)}', space=vmem, size = 0x12000, scoped, tag = 'internal scratch']
  %s0 = inlined_call_operand.vmem [shape: f32[2,16,128], index: 0, kind: input, shape index: {}]
  %s1 = inlined_call_operand.vmem [shape: bf16[128,384], index: 1, kind: input, shape index: {}]
  %s2 = inlined_call_operand.vmem [shape: f32[1,128], index: 2, kind: input, shape index: {}]
  %s3 = inlined_call_operand.vmem [shape: f32[1,128], index: 3, kind: input, shape index: {}]
  %s4 = inlined_call_operand.vmem [shape: f32[1,128], index: 4, kind: input, shape index: {}]
  %s5 = inlined_call_operand.vmem [shape: bf16[128,384], index: 5, kind: input, shape index: {}]
  %s6 = inlined_call_operand.vmem [shape: f32[1,128], index: 6, kind: input, shape index: {}]
  %s7 = inlined_call_operand.vmem [shape: f32[1,128], index: 7, kind: input, shape index: {}]
  %s8 = inlined_call_operand.vmem [shape: f32[1,128], index: 8, kind: input, shape index: {}]
  %s9 = inlined_call_operand.vmem [shape: f32[128,128], index: 9, kind: input, shape index: {}]
  %s10 = inlined_call_operand.vmem [shape: f32[2,16,128], index: 10, kind: output, shape index: {}]
  %s11 = sld [smem:[#allocation0]]
  $region73: #{polyoutdecblock_forward.1} parent=0
    _
  %s13 = ssub.s32 1, %s11
  %s14 = scalar_select 0, %s13, %s11
  loop: start=0, step=1, limit=4
  $region2: #{polyoutdecblock_forward.1} parent=0 // loop_pre_header
    _
  $region3: #{polyoutdecblock_forward.1} parent=0 // loop_header
    %s16 = sphi 0, %s20
    %p17 = scmp.ge.s32.totalorder %s16, 4
    %s26 = sphi 0, %s28
    %s29 = sphi 0, %s26
    %s30 = sphi 0, %s29
    %s46 = sphi 0, %s30
    %s50 = sphi 0, %s50
    %s52 = sphi 0, %s50
    %s53 = sphi 0, %s52
    %s67 = sphi 0, %s53
    %s71 = sphi 0, %s71
    %s73 = sphi 0, %s71
    %s74 = sphi 0, %s73
    %s88 = sphi 0, %s74
    %s92 = sphi 0, %s92
    %s94 = sphi 0, %s92
    %s95 = sphi 0, %s94
    %s109 = sphi 0, %s95
    %s113 = sphi 0, %s113
    %s115 = sphi 0, %s113
    %s116 = sphi 0, %s115
    %s130 = sphi 0, %s116
    %s134 = sphi 0, %s134
    %s136 = sphi 0, %s134
    %s137 = sphi 0, %s136
    %s151 = sphi 0, %s137
    %s155 = sphi 0, %s155
    %s157 = sphi 0, %s155
    %s158 = sphi 0, %s157
    %s172 = sphi 0, %s158
    %s176 = sphi 0, %s176
    %s178 = sphi 0, %s176
    %s179 = sphi 0, %s178
    %s193 = sphi 0, %s179
    %s197 = sphi 0, %s197
    %s199 = sphi 0, %s197
    %s200 = sphi 0, %s199
    %s214 = sphi 0, %s200
    %s218 = sphi 0, %s218
    %s220 = sphi 0, %s218
    %s221 = sphi 0, %s220
    %s235 = sphi 0, %s221
    %s241 = sphi 0, %s243
    %s244 = sphi 0, %s241
    %s245 = sphi 0, %s244
    %s261 = sphi 0, %s245
  $region4: #{polyoutdecblock_forward.1} parent=0 // loop_header_branch
    %19 = sbr.rel (%p17) target = $region8
  $region5: #{polyoutdecblock_forward.1} parent=0 // loop_body
    %s21 = ssub.s32 %s16, 1
    %s22 = ssub.s32 %s16, 2
    %s23 = sadd.s32 %s16, 1
    %s24 = ssub.s32 %s16, %s23
    %p25 = scmp.eq.s32.totalorder %s24, 0
    %s27 = sadd.s32 %s26, 1
    %s28 = scalar_select %p25, %s26, %s27
    %p31 = pneg %p25
    %p32 = scmp.eq.s32.totalorder %s16, 1
    %p33 = por %p31, %p32
    %p34 = scmp.ne.s32.totalorder %s26, %s29
    %p35 = scmp.eq.s32.totalorder %s16, 0
    %p36 = por %p34, %p35
    %p37 = scmp.ne.s32.totalorder %s26, %s29
    %p38 = scmp.eq.s32.totalorder %s21, 1
    %p39 = por %p37, %p38
    %p40 = scmp.ne.s32.totalorder %s29, %s30
    %p41 = scmp.eq.s32.totalorder %s21, 0
    %p42 = por %p40, %p41
    %p43 = scmp.ne.s32.totalorder %s29, %s30
    %p44 = scmp.eq.s32.totalorder %s22, 1
    %p45 = por %p43, %p44
    %p47 = scmp.ne.s32.totalorder %s30, %s46
    %p48 = scmp.eq.s32.totalorder %s22, 0
    %p49 = por %p47, %p48
    %s51 = sadd.s32 %s50, 1
    %p54 = scmp.eq.s32.totalorder %s16, 1
    %p55 = scmp.ne.s32.totalorder %s50, %s52
    %p56 = scmp.eq.s32.totalorder %s16, 0
    %p57 = por %p55, %p56
    %p58 = scmp.ne.s32.totalorder %s50, %s52
    %p59 = scmp.eq.s32.totalorder %s21, 1
    %p60 = por %p58, %p59
    %p61 = scmp.ne.s32.totalorder %s52, %s53
    %p62 = scmp.eq.s32.totalorder %s21, 0
    %p63 = por %p61, %p62
    %p64 = scmp.ne.s32.totalorder %s52, %s53
    %p65 = scmp.eq.s32.totalorder %s22, 1
    %p66 = por %p64, %p65
    %p68 = scmp.ne.s32.totalorder %s53, %s67
    %p69 = scmp.eq.s32.totalorder %s22, 0
    %p70 = por %p68, %p69
    %s72 = sadd.s32 %s71, 1
    %p75 = scmp.eq.s32.totalorder %s16, 1
    %p76 = scmp.ne.s32.totalorder %s71, %s73
    %p77 = scmp.eq.s32.totalorder %s16, 0
    %p78 = por %p76, %p77
    %p79 = scmp.ne.s32.totalorder %s71, %s73
    %p80 = scmp.eq.s32.totalorder %s21, 1
    %p81 = por %p79, %p80
    %p82 = scmp.ne.s32.totalorder %s73, %s74
    %p83 = scmp.eq.s32.totalorder %s21, 0
    %p84 = por %p82, %p83
    %p85 = scmp.ne.s32.totalorder %s73, %s74
    %p86 = scmp.eq.s32.totalorder %s22, 1
    %p87 = por %p85, %p86
    %p89 = scmp.ne.s32.totalorder %s74, %s88
    %p90 = scmp.eq.s32.totalorder %s22, 0
    %p91 = por %p89, %p90
    %s93 = sadd.s32 %s92, 1
    %p96 = scmp.eq.s32.totalorder %s16, 1
    %p97 = scmp.ne.s32.totalorder %s92, %s94
    %p98 = scmp.eq.s32.totalorder %s16, 0
    %p99 = por %p97, %p98
    %p100 = scmp.ne.s32.totalorder %s92, %s94
    %p101 = scmp.eq.s32.totalorder %s21, 1
    %p102 = por %p100, %p101
    %p103 = scmp.ne.s32.totalorder %s94, %s95
    %p104 = scmp.eq.s32.totalorder %s21, 0
    %p105 = por %p103, %p104
    %p106 = scmp.ne.s32.totalorder %s94, %s95
    %p107 = scmp.eq.s32.totalorder %s22, 1
    %p108 = por %p106, %p107
    %p110 = scmp.ne.s32.totalorder %s95, %s109
    %p111 = scmp.eq.s32.totalorder %s22, 0
    %p112 = por %p110, %p111
    %s114 = sadd.s32 %s113, 1
    %p117 = scmp.eq.s32.totalorder %s16, 1
    %p118 = scmp.ne.s32.totalorder %s113, %s115
    %p119 = scmp.eq.s32.totalorder %s16, 0
    %p120 = por %p118, %p119
    %p121 = scmp.ne.s32.totalorder %s113, %s115
    %p122 = scmp.eq.s32.totalorder %s21, 1
    %p123 = por %p121, %p122
    %p124 = scmp.ne.s32.totalorder %s115, %s116
    %p125 = scmp.eq.s32.totalorder %s21, 0
    %p126 = por %p124, %p125
    %p127 = scmp.ne.s32.totalorder %s115, %s116
    %p128 = scmp.eq.s32.totalorder %s22, 1
    %p129 = por %p127, %p128
    %p131 = scmp.ne.s32.totalorder %s116, %s130
    %p132 = scmp.eq.s32.totalorder %s22, 0
    %p133 = por %p131, %p132
    %s135 = sadd.s32 %s134, 1
    %p138 = scmp.eq.s32.totalorder %s16, 1
    %p139 = scmp.ne.s32.totalorder %s134, %s136
    %p140 = scmp.eq.s32.totalorder %s16, 0
    %p141 = por %p139, %p140
    %p142 = scmp.ne.s32.totalorder %s134, %s136
    %p143 = scmp.eq.s32.totalorder %s21, 1
    %p144 = por %p142, %p143
    %p145 = scmp.ne.s32.totalorder %s136, %s137
    %p146 = scmp.eq.s32.totalorder %s21, 0
    %p147 = por %p145, %p146
    %p148 = scmp.ne.s32.totalorder %s136, %s137
    %p149 = scmp.eq.s32.totalorder %s22, 1
    %p150 = por %p148, %p149
    %p152 = scmp.ne.s32.totalorder %s137, %s151
    %p153 = scmp.eq.s32.totalorder %s22, 0
    %p154 = por %p152, %p153
    %s156 = sadd.s32 %s155, 1
    %p159 = scmp.eq.s32.totalorder %s16, 1
    %p160 = scmp.ne.s32.totalorder %s155, %s157
    %p161 = scmp.eq.s32.totalorder %s16, 0
    %p162 = por %p160, %p161
    %p163 = scmp.ne.s32.totalorder %s155, %s157
    %p164 = scmp.eq.s32.totalorder %s21, 1
    %p165 = por %p163, %p164
    %p166 = scmp.ne.s32.totalorder %s157, %s158
    %p167 = scmp.eq.s32.totalorder %s21, 0
    %p168 = por %p166, %p167
    %p169 = scmp.ne.s32.totalorder %s157, %s158
    %p170 = scmp.eq.s32.totalorder %s22, 1
    %p171 = por %p169, %p170
    %p173 = scmp.ne.s32.totalorder %s158, %s172
    %p174 = scmp.eq.s32.totalorder %s22, 0
    %p175 = por %p173, %p174
    %s177 = sadd.s32 %s176, 1
    %p180 = scmp.eq.s32.totalorder %s16, 1
    %p181 = scmp.ne.s32.totalorder %s176, %s178
    %p182 = scmp.eq.s32.totalorder %s16, 0
    %p183 = por %p181, %p182
    %p184 = scmp.ne.s32.totalorder %s176, %s178
    %p185 = scmp.eq.s32.totalorder %s21, 1
    %p186 = por %p184, %p185
    %p187 = scmp.ne.s32.totalorder %s178, %s179
    %p188 = scmp.eq.s32.totalorder %s21, 0
    %p189 = por %p187, %p188
    %p190 = scmp.ne.s32.totalorder %s178, %s179
    %p191 = scmp.eq.s32.totalorder %s22, 1
    %p192 = por %p190, %p191
    %p194 = scmp.ne.s32.totalorder %s179, %s193
    %p195 = scmp.eq.s32.totalorder %s22, 0
    %p196 = por %p194, %p195
    %s198 = sadd.s32 %s197, 1
    %p201 = scmp.eq.s32.totalorder %s16, 1
    %p202 = scmp.ne.s32.totalorder %s197, %s199
    %p203 = scmp.eq.s32.totalorder %s16, 0
    %p204 = por %p202, %p203
    %p205 = scmp.ne.s32.totalorder %s197, %s199
    %p206 = scmp.eq.s32.totalorder %s21, 1
    %p207 = por %p205, %p206
    %p208 = scmp.ne.s32.totalorder %s199, %s200
    %p209 = scmp.eq.s32.totalorder %s21, 0
    %p210 = por %p208, %p209
    %p211 = scmp.ne.s32.totalorder %s199, %s200
    %p212 = scmp.eq.s32.totalorder %s22, 1
    %p213 = por %p211, %p212
    %p215 = scmp.ne.s32.totalorder %s200, %s214
    %p216 = scmp.eq.s32.totalorder %s22, 0
    %p217 = por %p215, %p216
    %s219 = sadd.s32 %s218, 1
    %p222 = scmp.eq.s32.totalorder %s16, 1
    %p223 = scmp.ne.s32.totalorder %s218, %s220
    %p224 = scmp.eq.s32.totalorder %s16, 0
    %p225 = por %p223, %p224
    %p226 = scmp.ne.s32.totalorder %s218, %s220
    %p227 = scmp.eq.s32.totalorder %s21, 1
    %p228 = por %p226, %p227
    %p229 = scmp.ne.s32.totalorder %s220, %s221
    %p230 = scmp.eq.s32.totalorder %s21, 0
    %p231 = por %p229, %p230
    %p232 = scmp.ne.s32.totalorder %s220, %s221
    %p233 = scmp.eq.s32.totalorder %s22, 1
    %p234 = por %p232, %p233
    %p236 = scmp.ne.s32.totalorder %s221, %s235
    %p237 = scmp.eq.s32.totalorder %s22, 0
    %p238 = por %p236, %p237
    %s239 = ssub.s32 %s16, %s23
    %p240 = scmp.eq.s32.totalorder %s239, 0
    %s242 = sadd.s32 %s241, 1
    %s243 = scalar_select %p240, %s241, %s242
    %p246 = pneg %p240
    %p247 = scmp.eq.s32.totalorder %s16, 1
    %p248 = por %p246, %p247
    %p249 = scmp.ne.s32.totalorder %s241, %s244
    %p250 = scmp.eq.s32.totalorder %s16, 0
    %p251 = por %p249, %p250
    %p252 = scmp.ne.s32.totalorder %s241, %s244
    %p253 = scmp.eq.s32.totalorder %s21, 1
    %p254 = por %p252, %p253
    %p255 = scmp.ne.s32.totalorder %s244, %s245
    %p256 = scmp.eq.s32.totalorder %s21, 0
    %p257 = por %p255, %p256
    %p258 = scmp.ne.s32.totalorder %s244, %s245
    %p259 = scmp.eq.s32.totalorder %s22, 1
    %p260 = por %p258, %p259
    %p262 = scmp.ne.s32.totalorder %s245, %s261
    %p263 = scmp.eq.s32.totalorder %s22, 0
    %p264 = por %p262, %p263
    %p265 = scmp.le.s32.totalorder 1, %s16
    %p266 = scmp.lt.s32.totalorder %s16, 3
    %p267 = pnand %p265, %p266
    %p268 = pneg %p267
    // Predicated region
    $region9: #{polyoutdecblock_forward.1} parent=5 // pred_check
      _
    $region10: #{polyoutdecblock_forward.1} parent=5 // pred_check_branch
      %270 = sbr.rel (%p267) target = $region12
    $region11: #{polyoutdecblock_forward.1} parent=5 // pred_region
      %s271 = ssub.s32 %s16, 1
      // Predicated region
      $region13: #{polyoutdecblock_forward.1} parent=11 // pred_check
        %p272 = pneg %p63
      $region14: #{polyoutdecblock_forward.1} parent=11 // pred_check_branch
        %274 = sbr.rel (%p272) target = $region16
      $region15: #{polyoutdecblock_forward.1} parent=11 // pred_region
        _
      $region16: #{polyoutdecblock_forward.1} parent=11 // pred_fallthru
        _
      // Predicated region
      $region17: #{polyoutdecblock_forward.1} parent=11 // pred_check
        %p275 = pneg %p84
      $region18: #{polyoutdecblock_forward.1} parent=11 // pred_check_branch
        %277 = sbr.rel (%p275) target = $region20
      $region19: #{polyoutdecblock_forward.1} parent=11 // pred_region
        _
      $region20: #{polyoutdecblock_forward.1} parent=11 // pred_fallthru
        _
      // Predicated region
      $region21: #{polyoutdecblock_forward.1} parent=11 // pred_check
        %p278 = pneg %p105
      $region22: #{polyoutdecblock_forward.1} parent=11 // pred_check_branch
        %280 = sbr.rel (%p278) target = $region24
      $region23: #{polyoutdecblock_forward.1} parent=11 // pred_region
        _
      $region24: #{polyoutdecblock_forward.1} parent=11 // pred_fallthru
        _
      // Predicated region
      $region25: #{polyoutdecblock_forward.1} parent=11 // pred_check
        %p281 = pneg %p126
      $region26: #{polyoutdecblock_forward.1} parent=11 // pred_check_branch
        %283 = sbr.rel (%p281) target = $region28
      $region27: #{polyoutdecblock_forward.1} parent=11 // pred_region
        _
      $region28: #{polyoutdecblock_forward.1} parent=11 // pred_fallthru
        _
      // Predicated region
      $region29: #{polyoutdecblock_forward.1} parent=11 // pred_check
        %p284 = pneg %p147
      $region30: #{polyoutdecblock_forward.1} parent=11 // pred_check_branch
        %286 = sbr.rel (%p284) target = $region32
      $region31: #{polyoutdecblock_forward.1} parent=11 // pred_region
        _
      $region32: #{polyoutdecblock_forward.1} parent=11 // pred_fallthru
        _
      // Predicated region
      $region33: #{polyoutdecblock_forward.1} parent=11 // pred_check
        %p287 = pneg %p168
      $region34: #{polyoutdecblock_forward.1} parent=11 // pred_check_branch
        %289 = sbr.rel (%p287) target = $region36
      $region35: #{polyoutdecblock_forward.1} parent=11 // pred_region
        _
      $region36: #{polyoutdecblock_forward.1} parent=11 // pred_fallthru
        _
      // Predicated region
      $region37: #{polyoutdecblock_forward.1} parent=11 // pred_check
        %p290 = pneg %p189
      $region38: #{polyoutdecblock_forward.1} parent=11 // pred_check_branch
        %292 = sbr.rel (%p290) target = $region40
      $region39: #{polyoutdecblock_forward.1} parent=11 // pred_region
        _
      $region40: #{polyoutdecblock_forward.1} parent=11 // pred_fallthru
        _
      // Predicated region
      $region41: #{polyoutdecblock_forward.1} parent=11 // pred_check
        %p293 = pneg %p210
      $region42: #{polyoutdecblock_forward.1} parent=11 // pred_check_branch
        %295 = sbr.rel (%p293) target = $region44
      $region43: #{polyoutdecblock_forward.1} parent=11 // pred_region
        _
      $region44: #{polyoutdecblock_forward.1} parent=11 // pred_fallthru
        _
      // Predicated region
      $region45: #{polyoutdecblock_forward.1} parent=11 // pred_check
        %p296 = pneg %p231
      $region46: #{polyoutdecblock_forward.1} parent=11 // pred_check_branch
        %298 = sbr.rel (%p296) target = $region48
      $region47: #{polyoutdecblock_forward.1} parent=11 // pred_region
        _
      $region48: #{polyoutdecblock_forward.1} parent=11 // pred_fallthru
        _
    $region12: #{polyoutdecblock_forward.1} parent=5 // pred_fallthru
      _
    %p299 = scmp.lt.s32.totalorder %s16, 2
    // Predicated region
    $region49: #{polyoutdecblock_forward.1} parent=5 // pred_check
      %p300 = pneg %p299
    $region50: #{polyoutdecblock_forward.1} parent=5 // pred_check_branch
      %302 = sbr.rel (%p300) target = $region52
    $region51: #{polyoutdecblock_forward.1} parent=5 // pred_region
      // Predicated region
      $region53: #{polyoutdecblock_forward.1} parent=51 // pred_check
        %p303 = pneg %p36
      $region54: #{polyoutdecblock_forward.1} parent=51 // pred_check_branch
        %305 = sbr.rel (%p303) target = $region56
      $region55: #{polyoutdecblock_forward.1} parent=51 // pred_region
        %p306 = scmp.lt.s32.totalorder %s16, 1
        %s307 = scalar_select %p306, %s16, 1
        %s308 = smul.addr %s307, 2
        %s309 = smul.addr %s308, 8
        %s310 = scalar_lea.vmem %s0, %s309
      $region56: #{polyoutdecblock_forward.1} parent=51 // pred_fallthru
        _
    $region52: #{polyoutdecblock_forward.1} parent=5 // pred_fallthru
      _
    %p311 = scmp.le.s32.totalorder 1, %s16
    %p312 = scmp.lt.s32.totalorder %s16, 3
    %p313 = pnand %p311, %p312
    %p314 = pneg %p313
    // Predicated region
    $region57: #{polyoutdecblock_forward.1} parent=5 // pred_check
      _
    $region58: #{polyoutdecblock_forward.1} parent=5 // pred_check_branch
      %316 = sbr.rel (%p313) target = $region60
    $region59: #{polyoutdecblock_forward.1} parent=5 // pred_region
      %s317 = ssub.s32 %s16, 1
      %p318 = scmp.lt.s32.totalorder %s21, 1
      %s319 = scalar_select %p318, %s21, 1
      %s320 = smul.addr %s319, 2
      %s321 = smul.addr %s320, 8
      %s322 = scalar_lea.vmem %s0, %s321
      %p323 = pneg %p42
      %p324 = pneg %p39
      %p325 = pneg %p63
      %p326 = pneg %p60
      %p327 = pneg %p84
      %p328 = pneg %p81
      %p329 = pneg %p105
      %p330 = pneg %p102
      %p331 = pneg %p126
      %p332 = pneg %p123
      %p333 = pneg %p147
      %p334 = pneg %p144
      %p335 = pneg %p168
      %p336 = pneg %p165
      %p337 = pneg %p189
      %p338 = pneg %p186
      %p339 = pneg %p210
      %p340 = pneg %p207
      %p341 = pneg %p231
      %p342 = pneg %p228
      %p343 = pneg %p257
      %p344 = pneg %p254
      %p345 = scmp.lt.s32.totalorder %s21, 1
      %s346 = scalar_select %p345, %s21, 1
      %s347 = smul.addr %s346, 2
      %s348 = smul.addr %s347, 8
      %s349 = scalar_lea.vmem %s10, %s348
      %p350 = scmp.lt.s32.totalorder %s21, 1
      %s351 = scalar_select %p350, %s21, 1
      %s352 = smul.addr %s351, 2
      %s353 = smul.addr %s352, 8
      %s354 = scalar_lea.vmem %s0, %s353
      %p355 = scmp.lt.s32.totalorder %s21, 1
      %s356 = scalar_select %p355, %s21, 1
      %s357 = smul.addr %s356, 2
      %s358 = smul.addr %s357, 8
      %s359 = scalar_lea.vmem %s10, %s358
      %v361 = vlaneseq
      %v362 = vshrl.u32 %v361, 7
      %v363 = vadd.s32 %v362, 8
      %v364 = vlaneseq
      %v365 = vand.u32 %v364, 127
      %v366 = vsub.s32 %v362, 1
      %v367 = vsub.s32 %v363, 1
      %vm368 = vcmp.eq.s32.totalorder %v365, %v366
      %vm369 = vcmp.eq.s32.totalorder %v365, %v367
      %v370 = vsel %vm368, 1, 0
      %v371 = vsel %vm369, 1, 0
      %v372 = vcvt.s32.f32 %v370
      %v373 = vcvt.s32.f32 %v371
      %v374 = vadd.s32 %v362, 1
      %v375 = vadd.s32 %v363, 1
      %vm376 = vcmp.eq.s32.totalorder %v365, %v374
      %vm377 = vcmp.eq.s32.totalorder %v365, %v375
      %v378 = vsel %vm376, 1, 0
      %v379 = vsel %vm377, 1, 0
      %v380 = vcvt.s32.f32 %v378
      %v381 = vcvt.s32.f32 %v379
      %v382 = vld [vmem:[%s9] sm:$0xff]
      %v383 = vld [vmem:[%s9 + $0x8] sm:$0xff]
      %v384 = vld [vmem:[%s9 + $0x10] sm:$0xff]
      %v385 = vld [vmem:[%s9 + $0x18] sm:$0xff]
      %v386 = vld [vmem:[%s9 + $0x20] sm:$0xff]
      %v387 = vld [vmem:[%s9 + $0x28] sm:$0xff]
      %v388 = vld [vmem:[%s9 + $0x30] sm:$0xff]
      %v389 = vld [vmem:[%s9 + $0x38] sm:$0xff]
      %v390 = vld [vmem:[%s9 + $0x40] sm:$0xff]
      %v391 = vld [vmem:[%s9 + $0x48] sm:$0xff]
      %v392 = vld [vmem:[%s9 + $0x50] sm:$0xff]
      %v393 = vld [vmem:[%s9 + $0x58] sm:$0xff]
      %v394 = vld [vmem:[%s9 + $0x60] sm:$0xff]
      %v395 = vld [vmem:[%s9 + $0x68] sm:$0xff]
      %v396 = vld [vmem:[%s9 + $0x70] sm:$0xff]
      %v397 = vld [vmem:[%s9 + $0x78] sm:$0xff]
      %v398 = vld [vmem:[%s354] sm:$0xff]
      %v399 = vld [vmem:[%s354 + $0x8] sm:$0xff]
      %v400 = vpack.c.bf16 %v399, %v398
      %v401 = vld [vmem:[%s1] sm:$0xff]
      %v402 = vld [vmem:[%s1 + $0x8] sm:$0xf]
      %v403 = vld [vmem:[%s1 + $0xc] sm:$0xff]
      %v404 = vld [vmem:[%s1 + $0x14] sm:$0xf]
      %v405 = vld [vmem:[%s1 + $0x18] sm:$0xff]
      %v406 = vld [vmem:[%s1 + $0x20] sm:$0xf]
      %v407 = vld [vmem:[%s1 + $0x24] sm:$0xff]
      %v408 = vld [vmem:[%s1 + $0x2c] sm:$0xf]
      %v409 = vld [vmem:[%s1 + $0x30] sm:$0xff]
      %v410 = vld [vmem:[%s1 + $0x38] sm:$0xf]
      %v411 = vld [vmem:[%s1 + $0x3c] sm:$0xff]
      %v412 = vld [vmem:[%s1 + $0x44] sm:$0xf]
      %v413 = vld [vmem:[%s1 + $0x48] sm:$0xff]
      %v414 = vld [vmem:[%s1 + $0x50] sm:$0xf]
      %v415 = vld [vmem:[%s1 + $0x54] sm:$0xff]
      %v416 = vld [vmem:[%s1 + $0x5c] sm:$0xf]
      %v417 = vld [vmem:[%s1 + $0x60] sm:$0xff]
      %v418 = vld [vmem:[%s1 + $0x68] sm:$0xf]
      %v419 = vld [vmem:[%s1 + $0x6c] sm:$0xff]
      %v420 = vld [vmem:[%s1 + $0x74] sm:$0xf]
      %v421 = vld [vmem:[%s1 + $0x78] sm:$0xff]
      %v422 = vld [vmem:[%s1 + $0x80] sm:$0xf]
      %v423 = vld [vmem:[%s1 + $0x84] sm:$0xff]
      %v424 = vld [vmem:[%s1 + $0x8c] sm:$0xf]
      %v425 = vld [vmem:[%s1 + $0x90] sm:$0xff]
      %v426 = vld [vmem:[%s1 + $0x98] sm:$0xf]
      %v427 = vld [vmem:[%s1 + $0x9c] sm:$0xff]
      %v428 = vld [vmem:[%s1 + $0xa4] sm:$0xf]
      %v429 = vld [vmem:[%s1 + $0xa8] sm:$0xff]
      %v430 = vld [vmem:[%s1 + $0xb0] sm:$0xf]
      %v431 = vld [vmem:[%s1 + $0xb4] sm:$0xff]
      %v432 = vld [vmem:[%s1 + $0xbc] sm:$0xf]
      %v465 = vunpack.c.l.b16 %v401
      %v466 = vunpack.c.h.b16 %v401
      %v467 = vunpack.c.l.b16 %v402
      %v468 = vunpack.c.l.b16 %v403
      %v469 = vunpack.c.h.b16 %v403
      %v470 = vunpack.c.l.b16 %v404
      %v471 = vunpack.c.l.b16 %v405
      %v472 = vunpack.c.h.b16 %v405
      %v473 = vunpack.c.l.b16 %v406
      %v474 = vunpack.c.l.b16 %v407
      %v475 = vunpack.c.h.b16 %v407
      %v476 = vunpack.c.l.b16 %v408
      %v477 = vunpack.c.l.b16 %v409
      %v478 = vunpack.c.h.b16 %v409
      %v479 = vunpack.c.l.b16 %v410
      %v480 = vunpack.c.l.b16 %v411
      %v481 = vunpack.c.h.b16 %v411
      %v482 = vunpack.c.l.b16 %v412
      %v483 = vunpack.c.l.b16 %v413
      %v484 = vunpack.c.h.b16 %v413
      %v485 = vunpack.c.l.b16 %v414
      %v486 = vunpack.c.l.b16 %v415
      %v487 = vunpack.c.h.b16 %v415
      %v488 = vunpack.c.l.b16 %v416
      %v489 = vunpack.c.l.b16 %v417
      %v490 = vunpack.c.h.b16 %v417
      %v491 = vunpack.c.l.b16 %v418
      %v492 = vunpack.c.l.b16 %v419
      %v493 = vunpack.c.h.b16 %v419
      %v494 = vunpack.c.l.b16 %v420
      %v495 = vunpack.c.l.b16 %v421
      %v496 = vunpack.c.h.b16 %v421
      %v497 = vunpack.c.l.b16 %v422
      %v498 = vunpack.c.l.b16 %v423
      %v499 = vunpack.c.h.b16 %v423
      %v500 = vunpack.c.l.b16 %v424
      %v501 = vunpack.c.l.b16 %v425
      %v502 = vunpack.c.h.b16 %v425
      %v503 = vunpack.c.l.b16 %v426
      %v504 = vunpack.c.l.b16 %v427
      %v505 = vunpack.c.h.b16 %v427
      %v506 = vunpack.c.l.b16 %v428
      %v507 = vunpack.c.l.b16 %v429
      %v508 = vunpack.c.h.b16 %v429
      %v509 = vunpack.c.l.b16 %v430
      %v510 = vunpack.c.l.b16 %v431
      %v511 = vunpack.c.h.b16 %v431
      %v512 = vunpack.c.l.b16 %v432
      %v513 = vpack.c.b16 %v468, %v465
      %v514 = vpack.c.b16 %v469, %v466
      %v515 = vpack.c.b16 %v470, %v467
      %v516 = vpack.c.b16 %v474, %v471
      %v517 = vpack.c.b16 %v475, %v472
      %v518 = vpack.c.b16 %v476, %v473
      %v519 = vpack.c.b16 %v480, %v477
      %v520 = vpack.c.b16 %v481, %v478
      %v521 = vpack.c.b16 %v482, %v479
      %v522 = vpack.c.b16 %v486, %v483
      %v523 = vpack.c.b16 %v487, %v484
      %v524 = vpack.c.b16 %v488, %v485
      %v525 = vpack.c.b16 %v492, %v489
      %v526 = vpack.c.b16 %v493, %v490
      %v527 = vpack.c.b16 %v494, %v491
      %v528 = vpack.c.b16 %v498, %v495
      %v529 = vpack.c.b16 %v499, %v496
      %v530 = vpack.c.b16 %v500, %v497
      %v531 = vpack.c.b16 %v504, %v501
      %v532 = vpack.c.b16 %v505, %v502
      %v533 = vpack.c.b16 %v506, %v503
      %v534 = vpack.c.b16 %v510, %v507
      %v535 = vpack.c.b16 %v511, %v508
      %v536 = vpack.c.b16 %v512, %v509
      %561 = vmatprep.subr.bf16.mxu0 %v514
      %562 = vmatpush1.bf16.msra.mxu0 %v513
      %563 = vmatprep.subr.bf16.mxu0 %v517
      %564 = vmatpush1.bf16.msra.mxu0 %v516
      %565 = vmatprep.subr.bf16.mxu0 %v520
      %566 = vmatpush1.bf16.msra.mxu0 %v519
      %567 = vmatprep.subr.bf16.mxu0 %v523
      %568 = vmatpush1.bf16.msra.mxu0 %v522
      %569 = vmatprep.subr.bf16.mxu0 %v526
      %570 = vmatpush1.bf16.msra.mxu0 %v525
      %571 = vmatprep.subr.bf16.mxu0 %v529
      %572 = vmatpush1.bf16.msra.mxu0 %v528
      %573 = vmatprep.subr.bf16.mxu0 %v532
      %574 = vmatpush1.bf16.msra.mxu0 %v531
      %575 = vmatprep.subr.bf16.mxu0 %v535
      %576 = vmatpush1.bf16.msra.mxu0 %v534
      %577 = vmatprep.subr.bf16.mxu0 0
      %578 = vmatpush1.bf16.msra.mxu0 0
      %579 = vmatprep.subr.bf16.mxu0 0
      %580 = vmatpush1.bf16.msra.mxu0 0
      %581 = vmatprep.subr.bf16.mxu0 0
      %582 = vmatpush1.bf16.msra.mxu0 0
      %583 = vmatprep.subr.bf16.mxu0 0
      %584 = vmatpush1.bf16.msra.mxu0 0
      %585 = vmatprep.subr.bf16.mxu0 0
      %586 = vmatpush1.bf16.msra.mxu0 0
      %587 = vmatprep.subr.bf16.mxu0 0
      %588 = vmatpush1.bf16.msra.mxu0 0
      %589 = vmatprep.subr.bf16.mxu0 0
      %590 = vmatpush1.bf16.msra.mxu0 0
      %591 = vmatprep.subr.bf16.mxu0 0
      %592 = vmatpush1.bf16.msra.mxu0 0
      %593 = vmatprep.mubr.bf16.mxu0 0
      %594 = vmatmul.mubr.bf16.gmra.mrb[0].mxu0 %v400
      %v595 = vpop.f32.mrb[0].mxu0
      %v596 = vadd.f32 0.0, %v595
      %v597 = vpop.f32.mrb[0].mxu0
      %v598 = vadd.f32 0.0, %v597
      %v599 = vpop.f32.mrb[0].mxu0
      %v600 = vadd.f32 0.0, %v599
      %v601 = vpop.f32.mrb[0].mxu0
      %v602 = vadd.f32 0.0, %v601
      %603 = vdwg.mxu0
      %604 = vmatprep.subr.bf16.mxu0 0
      %605 = vmatpush1.bf16.msra.mxu0 %v515
      %606 = vmatprep.subr.bf16.mxu0 0
      %607 = vmatpush1.bf16.msra.mxu0 %v518
      %608 = vmatprep.subr.bf16.mxu0 0
      %609 = vmatpush1.bf16.msra.mxu0 %v521
      %610 = vmatprep.subr.bf16.mxu0 0
      %611 = vmatpush1.bf16.msra.mxu0 %v524
      %612 = vmatprep.subr.bf16.mxu0 0
      %613 = vmatpush1.bf16.msra.mxu0 %v527
      %614 = vmatprep.subr.bf16.mxu0 0
      %615 = vmatpush1.bf16.msra.mxu0 %v530
      %616 = vmatprep.subr.bf16.mxu0 0
      %617 = vmatpush1.bf16.msra.mxu0 %v533
      %618 = vmatprep.subr.bf16.mxu0 0
      %619 = vmatpush1.bf16.msra.mxu0 %v536
      %620 = vmatprep.subr.bf16.mxu0 0
      %621 = vmatpush1.bf16.msra.mxu0 0
      %622 = vmatprep.subr.bf16.mxu0 0
      %623 = vmatpush1.bf16.msra.mxu0 0
      %624 = vmatprep.subr.bf16.mxu0 0
      %625 = vmatpush1.bf16.msra.mxu0 0
      %626 = vmatprep.subr.bf16.mxu0 0
      %627 = vmatpush1.bf16.msra.mxu0 0
      %628 = vmatprep.subr.bf16.mxu0 0
      %629 = vmatpush1.bf16.msra.mxu0 0
      %630 = vmatprep.subr.bf16.mxu0 0
      %631 = vmatpush1.bf16.msra.mxu0 0
      %632 = vmatprep.subr.bf16.mxu0 0
      %633 = vmatpush1.bf16.msra.mxu0 0
      %634 = vmatprep.subr.bf16.mxu0 0
      %635 = vmatpush1.bf16.msra.mxu0 0
      %636 = vmatprep.mubr.bf16.mxu0 0
      %637 = vmatmul.mubr.bf16.gmra.mrb[0].mxu0 %v400
      %v638 = vpop.f32.mrb[0].mxu0
      %v639 = vadd.f32 0.0, %v638
      %v640 = vpop.f32.mrb[0].mxu0
      %v641 = vpop.f32.mrb[0].mxu0
      %v642 = vadd.f32 0.0, %v641
      %v643 = vpop.f32.mrb[0].mxu0
      %644 = vdwg.mxu0
      %vm645 = vcmask 130048
      %v647 = vsel %vm645, %v372, 0
      %v650 = vsel %vm645, %v373, 0
      %652 = vmatprep.subr.mxu0 0.0
      %653 = vmatpush1.msra.mxu0 %v596
      %654 = vmatprep.subr.mxu0 0.0
      %655 = vmatpush1.msra.mxu0 %v600
      %656 = vmatprep.subr.mxu0 0.0
      %657 = vmatpush1.msra.mxu0 0.0
      %658 = vmatprep.subr.mxu0 0.0
      %659 = vmatpush1.msra.mxu0 0.0
      %660 = vmatprep.subr.mxu0 0.0
      %661 = vmatpush1.msra.mxu0 0.0
      %662 = vmatprep.subr.mxu0 0.0
      %663 = vmatpush1.msra.mxu0 0.0
      %664 = vmatprep.subr.mxu0 0.0
      %665 = vmatpush1.msra.mxu0 0.0
      %666 = vmatprep.subr.mxu0 0.0
      %667 = vmatpush1.msra.mxu0 0.0
      %668 = vmatprep.subr.mxu0 0.0
      %669 = vmatpush1.msra.mxu0 0.0
      %670 = vmatprep.subr.mxu0 0.0
      %671 = vmatpush1.msra.mxu0 0.0
      %672 = vmatprep.subr.mxu0 0.0
      %673 = vmatpush1.msra.mxu0 0.0
      %674 = vmatprep.subr.mxu0 0.0
      %675 = vmatpush1.msra.mxu0 0.0
      %676 = vmatprep.subr.mxu0 0.0
      %677 = vmatpush1.msra.mxu0 0.0
      %678 = vmatprep.subr.mxu0 0.0
      %679 = vmatpush1.msra.mxu0 0.0
      %680 = vmatprep.subr.mxu0 0.0
      %681 = vmatpush1.msra.mxu0 0.0
      %682 = vmatprep.subr.mxu0 0.0
      %683 = vmatpush1.msra.mxu0 0.0
      %684 = vmatprep.subr.mxu0 0.0
      %685 = vmatpush1.msra.mxu0 0.0
      %686 = vmatprep.subr.mxu0 0.0
      %687 = vmatpush1.msra.mxu0 0.0
      %688 = vmatprep.subr.mxu0 0.0
      %689 = vmatpush1.msra.mxu0 0.0
      %690 = vmatprep.subr.mxu0 0.0
      %691 = vmatpush1.msra.mxu0 0.0
      %692 = vmatprep.subr.mxu0 0.0
      %693 = vmatpush1.msra.mxu0 0.0
      %694 = vmatprep.subr.mxu0 0.0
      %695 = vmatpush1.msra.mxu0 0.0
      %696 = vmatprep.subr.mxu0 0.0
      %697 = vmatpush1.msra.mxu0 0.0
      %698 = vmatprep.subr.mxu0 0.0
      %699 = vmatpush1.msra.mxu0 0.0
      %700 = vmatprep.subr.mxu0 0.0
      %701 = vmatpush1.msra.mxu0 0.0
      %702 = vmatprep.subr.mxu0 0.0
      %703 = vmatpush1.msra.mxu0 0.0
      %704 = vmatprep.subr.mxu0 0.0
      %705 = vmatpush1.msra.mxu0 0.0
      %706 = vmatprep.subr.mxu0 0.0
      %707 = vmatpush1.msra.mxu0 0.0
      %708 = vmatprep.subr.mxu0 0.0
      %709 = vmatpush1.msra.mxu0 0.0
      %710 = vmatprep.subr.mxu0 0.0
      %711 = vmatpush1.msra.mxu0 0.0
      %712 = vmatprep.subr.mxu0 0.0
      %713 = vmatpush1.msra.mxu0 0.0
      %714 = vmatprep.subr.mxu0 0.0
      %715 = vmatpush1.msra.mxu0 0.0
      %716 = vmatprep.mubr.f32.mxu0 0.0
      %717 = vmatmul.mubr.f32.gmra.mrb[0].mxu0 %v647
      %v718 = vpop.f32.mrb[0].mxu0
      %v719 = vadd.f32 %v598, %v718
      %v720 = vpop.f32.mrb[0].mxu0
      %721 = vmatprep.mubr.f32.mxu0 0.0
      %722 = vmatmul.mubr.f32.gmra.mrb[0].mxu0 %v650
      %v723 = vpop.f32.mrb[0].mxu0
      %v724 = vadd.f32 %v602, %v723
      %v725 = vpop.f32.mrb[0].mxu0
      %726 = vdwg.mxu0
      %v728 = vsel %vm645, %v380, 0
      %v731 = vsel %vm645, %v381, 0
      %733 = vmatprep.subr.mxu0 0.0
      %734 = vmatpush1.msra.mxu0 %v639
      %735 = vmatprep.subr.mxu0 0.0
      %736 = vmatpush1.msra.mxu0 %v642
      %737 = vmatprep.subr.mxu0 0.0
      %738 = vmatpush1.msra.mxu0 0.0
      %739 = vmatprep.subr.mxu0 0.0
      %740 = vmatpush1.msra.mxu0 0.0
      %741 = vmatprep.subr.mxu0 0.0
      %742 = vmatpush1.msra.mxu0 0.0
      %743 = vmatprep.subr.mxu0 0.0
      %744 = vmatpush1.msra.mxu0 0.0
      %745 = vmatprep.subr.mxu0 0.0
      %746 = vmatpush1.msra.mxu0 0.0
      %747 = vmatprep.subr.mxu0 0.0
      %748 = vmatpush1.msra.mxu0 0.0
      %749 = vmatprep.subr.mxu0 0.0
      %750 = vmatpush1.msra.mxu0 0.0
      %751 = vmatprep.subr.mxu0 0.0
      %752 = vmatpush1.msra.mxu0 0.0
      %753 = vmatprep.subr.mxu0 0.0
      %754 = vmatpush1.msra.mxu0 0.0
      %755 = vmatprep.subr.mxu0 0.0
      %756 = vmatpush1.msra.mxu0 0.0
      %757 = vmatprep.subr.mxu0 0.0
      %758 = vmatpush1.msra.mxu0 0.0
      %759 = vmatprep.subr.mxu0 0.0
      %760 = vmatpush1.msra.mxu0 0.0
      %761 = vmatprep.subr.mxu0 0.0
      %762 = vmatpush1.msra.mxu0 0.0
      %763 = vmatprep.subr.mxu0 0.0
      %764 = vmatpush1.msra.mxu0 0.0
      %765 = vmatprep.subr.mxu0 0.0
      %766 = vmatpush1.msra.mxu0 0.0
      %767 = vmatprep.subr.mxu0 0.0
      %768 = vmatpush1.msra.mxu0 0.0
      %769 = vmatprep.subr.mxu0 0.0
      %770 = vmatpush1.msra.mxu0 0.0
      %771 = vmatprep.subr.mxu0 0.0
      %772 = vmatpush1.msra.mxu0 0.0
      %773 = vmatprep.subr.mxu0 0.0
      %774 = vmatpush1.msra.mxu0 0.0
      %775 = vmatprep.subr.mxu0 0.0
      %776 = vmatpush1.msra.mxu0 0.0
      %777 = vmatprep.subr.mxu0 0.0
      %778 = vmatpush1.msra.mxu0 0.0
      %779 = vmatprep.subr.mxu0 0.0
      %780 = vmatpush1.msra.mxu0 0.0
      %781 = vmatprep.subr.mxu0 0.0
      %782 = vmatpush1.msra.mxu0 0.0
      %783 = vmatprep.subr.mxu0 0.0
      %784 = vmatpush1.msra.mxu0 0.0
      %785 = vmatprep.subr.mxu0 0.0
      %786 = vmatpush1.msra.mxu0 0.0
      %787 = vmatprep.subr.mxu0 0.0
      %788 = vmatpush1.msra.mxu0 0.0
      %789 = vmatprep.subr.mxu0 0.0
      %790 = vmatpush1.msra.mxu0 0.0
      %791 = vmatprep.subr.mxu0 0.0
      %792 = vmatpush1.msra.mxu0 0.0
      %793 = vmatprep.subr.mxu0 0.0
      %794 = vmatpush1.msra.mxu0 0.0
      %795 = vmatprep.subr.mxu0 0.0
      %796 = vmatpush1.msra.mxu0 0.0
      %797 = vmatprep.mubr.f32.mxu0 0.0
      %798 = vmatmul.mubr.f32.gmra.mrb[0].mxu0 %v728
      %v799 = vpop.f32.mrb[0].mxu0
      %v800 = vadd.f32 0.0, %v799
      %v801 = vpop.f32.mrb[0].mxu0
      %802 = vmatprep.mubr.f32.mxu0 0.0
      %803 = vmatmul.mubr.f32.gmra.mrb[0].mxu0 %v731
      %v804 = vpop.f32.mrb[0].mxu0
      %v805 = vadd.f32 0.0, %v804
      %v806 = vpop.f32.mrb[0].mxu0
      %807 = vdwg.mxu0
      %v808 = vadd.f32 %v719, %v800
      %v809 = vadd.f32 %v724, %v805
      %v810 = vld [vmem:[%s2] sm:$0x1]
      %v812 = vlaneseq
      %v813 = vshrl.u32 %v812, 7
      %v814 = vsub.s32 0, %v813
      %v815 = vrot.slane %v810, %v814
      %v817 = vadd.f32 %v808, %v815
      %v818 = vadd.f32 %v809, %v815
      %v819 = vadd.f32 %v817, %v818
      %v820 = vrot.slane %v819, 4
      %v821 = vadd.f32 %v819, %v820
      %v822 = vrot.slane %v821, 2
      %v823 = vadd.f32 %v821, %v822
      %v824 = vrot.slane %v823, 1
      %v825 = vadd.f32 %v823, %v824
      %v826 = vmul.f32 %v817, %v817
      %v827 = vmul.f32 %v818, %v818
      %v828 = vadd.f32 %v826, %v827
      %v829 = vrot.slane %v828, 4
      %v830 = vadd.f32 %v828, %v829
      %v831 = vrot.slane %v830, 2
      %v832 = vadd.f32 %v830, %v831
      %v833 = vrot.slane %v832, 1
      %v834 = vadd.f32 %v832, %v833
      %835 = vmatprep.subr.mxu0 0.0
      %836 = vmatpush1.msra.mxu0 %v382
      %837 = vmatprep.subr.mxu0 0.0
      %838 = vmatpush1.msra.mxu0 %v383
      %839 = vmatprep.subr.mxu0 0.0
      %840 = vmatpush1.msra.mxu0 %v384
      %841 = vmatprep.subr.mxu0 0.0
      %842 = vmatpush1.msra.mxu0 %v385
      %843 = vmatprep.subr.mxu0 0.0
      %844 = vmatpush1.msra.mxu0 %v386
      %845 = vmatprep.subr.mxu0 0.0
      %846 = vmatpush1.msra.mxu0 %v387
      %847 = vmatprep.subr.mxu0 0.0
      %848 = vmatpush1.msra.mxu0 %v388
      %849 = vmatprep.subr.mxu0 0.0
      %850 = vmatpush1.msra.mxu0 %v389
      %851 = vmatprep.subr.mxu0 0.0
      %852 = vmatpush1.msra.mxu0 %v390
      %853 = vmatprep.subr.mxu0 0.0
      %854 = vmatpush1.msra.mxu0 %v391
      %855 = vmatprep.subr.mxu0 0.0
      %856 = vmatpush1.msra.mxu0 %v392
      %857 = vmatprep.subr.mxu0 0.0
      %858 = vmatpush1.msra.mxu0 %v393
      %859 = vmatprep.subr.mxu0 0.0
      %860 = vmatpush1.msra.mxu0 %v394
      %861 = vmatprep.subr.mxu0 0.0
      %862 = vmatpush1.msra.mxu0 %v395
      %863 = vmatprep.subr.mxu0 0.0
      %864 = vmatpush1.msra.mxu0 %v396
      %865 = vmatprep.subr.mxu0 0.0
      %866 = vmatpush1.msra.mxu0 %v397
      %867 = vmatprep.subr.mxu0 0.0
      %868 = vmatpush1.msra.mxu0 0.0
      %869 = vmatprep.subr.mxu0 0.0
      %870 = vmatpush1.msra.mxu0 0.0
      %871 = vmatprep.subr.mxu0 0.0
      %872 = vmatpush1.msra.mxu0 0.0
      %873 = vmatprep.subr.mxu0 0.0
      %874 = vmatpush1.msra.mxu0 0.0
      %875 = vmatprep.subr.mxu0 0.0
      %876 = vmatpush1.msra.mxu0 0.0
      %877 = vmatprep.subr.mxu0 0.0
      %878 = vmatpush1.msra.mxu0 0.0
      %879 = vmatprep.subr.mxu0 0.0
      %880 = vmatpush1.msra.mxu0 0.0
      %881 = vmatprep.subr.mxu0 0.0
      %882 = vmatpush1.msra.mxu0 0.0
      %883 = vmatprep.subr.mxu0 0.0
      %884 = vmatpush1.msra.mxu0 0.0
      %885 = vmatprep.subr.mxu0 0.0
      %886 = vmatpush1.msra.mxu0 0.0
      %887 = vmatprep.subr.mxu0 0.0
      %888 = vmatpush1.msra.mxu0 0.0
      %889 = vmatprep.subr.mxu0 0.0
      %890 = vmatpush1.msra.mxu0 0.0
      %891 = vmatprep.subr.mxu0 0.0
      %892 = vmatpush1.msra.mxu0 0.0
      %893 = vmatprep.subr.mxu0 0.0
      %894 = vmatpush1.msra.mxu0 0.0
      %895 = vmatprep.subr.mxu0 0.0
      %896 = vmatpush1.msra.mxu0 0.0
      %897 = vmatprep.subr.mxu0 0.0
      %898 = vmatpush1.msra.mxu0 0.0
      %899 = vmatprep.mubr.f32.mxu0 0.0
      %900 = vmatmul.mubr.f32.gmra.mrb[0].mxu0 %v825
      %v901 = vpop.f32.mrb[0].mxu0
      %v902 = vadd.f32 0.0, %v901
      %v903 = vpop.f32.mrb[0].mxu0
      %904 = vdwg.mxu0
      %v905 = vmul.f32 %v902, 0.00390625
      %906 = vmatprep.subr.mxu0 0.0
      %907 = vmatpush1.msra.mxu0 %v382
      %908 = vmatprep.subr.mxu0 0.0
      %909 = vmatpush1.msra.mxu0 %v383
      %910 = vmatprep.subr.mxu0 0.0
      %911 = vmatpush1.msra.mxu0 %v384
      %912 = vmatprep.subr.mxu0 0.0
      %913 = vmatpush1.msra.mxu0 %v385
      %914 = vmatprep.subr.mxu0 0.0
      %915 = vmatpush1.msra.mxu0 %v386
      %916 = vmatprep.subr.mxu0 0.0
      %917 = vmatpush1.msra.mxu0 %v387
      %918 = vmatprep.subr.mxu0 0.0
      %919 = vmatpush1.msra.mxu0 %v388
      %920 = vmatprep.subr.mxu0 0.0
      %921 = vmatpush1.msra.mxu0 %v389
      %922 = vmatprep.subr.mxu0 0.0
      %923 = vmatpush1.msra.mxu0 %v390
      %924 = vmatprep.subr.mxu0 0.0
      %925 = vmatpush1.msra.mxu0 %v391
      %926 = vmatprep.subr.mxu0 0.0
      %927 = vmatpush1.msra.mxu0 %v392
      %928 = vmatprep.subr.mxu0 0.0
      %929 = vmatpush1.msra.mxu0 %v393
      %930 = vmatprep.subr.mxu0 0.0
      %931 = vmatpush1.msra.mxu0 %v394
      %932 = vmatprep.subr.mxu0 0.0
      %933 = vmatpush1.msra.mxu0 %v395
      %934 = vmatprep.subr.mxu0 0.0
      %935 = vmatpush1.msra.mxu0 %v396
      %936 = vmatprep.subr.mxu0 0.0
      %937 = vmatpush1.msra.mxu0 %v397
      %938 = vmatprep.subr.mxu0 0.0
      %939 = vmatpush1.msra.mxu0 0.0
      %940 = vmatprep.subr.mxu0 0.0
      %941 = vmatpush1.msra.mxu0 0.0
      %942 = vmatprep.subr.mxu0 0.0
      %943 = vmatpush1.msra.mxu0 0.0
      %944 = vmatprep.subr.mxu0 0.0
      %945 = vmatpush1.msra.mxu0 0.0
      %946 = vmatprep.subr.mxu0 0.0
      %947 = vmatpush1.msra.mxu0 0.0
      %948 = vmatprep.subr.mxu0 0.0
      %949 = vmatpush1.msra.mxu0 0.0
      %950 = vmatprep.subr.mxu0 0.0
      %951 = vmatpush1.msra.mxu0 0.0
      %952 = vmatprep.subr.mxu0 0.0
      %953 = vmatpush1.msra.mxu0 0.0
      %954 = vmatprep.subr.mxu0 0.0
      %955 = vmatpush1.msra.mxu0 0.0
      %956 = vmatprep.subr.mxu0 0.0
      %957 = vmatpush1.msra.mxu0 0.0
      %958 = vmatprep.subr.mxu0 0.0
      %959 = vmatpush1.msra.mxu0 0.0
      %960 = vmatprep.subr.mxu0 0.0
      %961 = vmatpush1.msra.mxu0 0.0
      %962 = vmatprep.subr.mxu0 0.0
      %963 = vmatpush1.msra.mxu0 0.0
      %964 = vmatprep.subr.mxu0 0.0
      %965 = vmatpush1.msra.mxu0 0.0
      %966 = vmatprep.subr.mxu0 0.0
      %967 = vmatpush1.msra.mxu0 0.0
      %968 = vmatprep.subr.mxu0 0.0
      %969 = vmatpush1.msra.mxu0 0.0
      %970 = vmatprep.mubr.f32.mxu0 0.0
      %971 = vmatmul.mubr.f32.gmra.mrb[0].mxu0 %v834
      %v972 = vpop.f32.mrb[0].mxu0
      %v973 = vadd.f32 0.0, %v972
      %v974 = vpop.f32.mrb[0].mxu0
      %975 = vdwg.mxu0
      %v976 = vmul.f32 %v973, 0.00390625
      %v977 = vmul.f32 %v905, %v905
      %v978 = vsub.f32 %v976, %v977
      %v979 = vmax.f32 %v978, 0.0
      %v980 = vadd.f32 %v979, 1e-05
      %v981 = vrsqrt.pop %v980
      %v982 = vlaneseq
      %v983 = vshrl.u32 %v982, 7
      %v984 = vsub.s32 0, %v983
      %v985 = vrot.slane %v905, %v984
      %v986 = vsub.f32 %v817, %v985
      %v987 = vsub.f32 %v818, %v985
      %v988 = vld [vmem:[%s3] sm:$0x1]
      %v989 = vmul.f32 %v981, %v988
      %v990 = vlaneseq
      %v991 = vshrl.u32 %v990, 7
      %v992 = vsub.s32 0, %v991
      %v993 = vrot.slane %v989, %v992
      %v994 = vmul.f32 %v986, %v993
      %v995 = vmul.f32 %v987, %v993
      %v996 = vld [vmem:[%s4] sm:$0x1]
      %v998 = vlaneseq
      %v999 = vshrl.u32 %v998, 7
      %v1000 = vsub.s32 0, %v999
      %v1001 = vrot.slane %v996, %v1000
      %v1003 = vadd.f32 %v994, %v1001
      %v1004 = vadd.f32 %v995, %v1001
      %v1005 = vmax.f32 %v1003, 0.0
      %v1006 = vmax.f32 %v1004, 0.0
      %v1007 = vpack.c.bf16 %v1006, %v1005
      %v1008 = vld [vmem:[%s5] sm:$0xff]
      %v1009 = vld [vmem:[%s5 + $0x8] sm:$0xf]
      %v1010 = vld [vmem:[%s5 + $0xc] sm:$0xff]
      %v1011 = vld [vmem:[%s5 + $0x14] sm:$0xf]
      %v1012 = vld [vmem:[%s5 + $0x18] sm:$0xff]
      %v1013 = vld [vmem:[%s5 + $0x20] sm:$0xf]
      %v1014 = vld [vmem:[%s5 + $0x24] sm:$0xff]
      %v1015 = vld [vmem:[%s5 + $0x2c] sm:$0xf]
      %v1016 = vld [vmem:[%s5 + $0x30] sm:$0xff]
      %v1017 = vld [vmem:[%s5 + $0x38] sm:$0xf]
      %v1018 = vld [vmem:[%s5 + $0x3c] sm:$0xff]
      %v1019 = vld [vmem:[%s5 + $0x44] sm:$0xf]
      %v1020 = vld [vmem:[%s5 + $0x48] sm:$0xff]
      %v1021 = vld [vmem:[%s5 + $0x50] sm:$0xf]
      %v1022 = vld [vmem:[%s5 + $0x54] sm:$0xff]
      %v1023 = vld [vmem:[%s5 + $0x5c] sm:$0xf]
      %v1024 = vld [vmem:[%s5 + $0x60] sm:$0xff]
      %v1025 = vld [vmem:[%s5 + $0x68] sm:$0xf]
      %v1026 = vld [vmem:[%s5 + $0x6c] sm:$0xff]
      %v1027 = vld [vmem:[%s5 + $0x74] sm:$0xf]
      %v1028 = vld [vmem:[%s5 + $0x78] sm:$0xff]
      %v1029 = vld [vmem:[%s5 + $0x80] sm:$0xf]
      %v1030 = vld [vmem:[%s5 + $0x84] sm:$0xff]
      %v1031 = vld [vmem:[%s5 + $0x8c] sm:$0xf]
      %v1032 = vld [vmem:[%s5 + $0x90] sm:$0xff]
      %v1033 = vld [vmem:[%s5 + $0x98] sm:$0xf]
      %v1034 = vld [vmem:[%s5 + $0x9c] sm:$0xff]
      %v1035 = vld [vmem:[%s5 + $0xa4] sm:$0xf]
      %v1036 = vld [vmem:[%s5 + $0xa8] sm:$0xff]
      %v1037 = vld [vmem:[%s5 + $0xb0] sm:$0xf]
      %v1038 = vld [vmem:[%s5 + $0xb4] sm:$0xff]
      %v1039 = vld [vmem:[%s5 + $0xbc] sm:$0xf]
      %v1072 = vunpack.c.l.b16 %v1008
      %v1073 = vunpack.c.h.b16 %v1008
      %v1074 = vunpack.c.l.b16 %v1009
      %v1075 = vunpack.c.l.b16 %v1010
      %v1076 = vunpack.c.h.b16 %v1010
      %v1077 = vunpack.c.l.b16 %v1011
      %v1078 = vunpack.c.l.b16 %v1012
      %v1079 = vunpack.c.h.b16 %v1012
      %v1080 = vunpack.c.l.b16 %v1013
      %v1081 = vunpack.c.l.b16 %v1014
      %v1082 = vunpack.c.h.b16 %v1014
      %v1083 = vunpack.c.l.b16 %v1015
      %v1084 = vunpack.c.l.b16 %v1016
      %v1085 = vunpack.c.h.b16 %v1016
      %v1086 = vunpack.c.l.b16 %v1017
      %v1087 = vunpack.c.l.b16 %v1018
      %v1088 = vunpack.c.h.b16 %v1018
      %v1089 = vunpack.c.l.b16 %v1019
      %v1090 = vunpack.c.l.b16 %v1020
      %v1091 = vunpack.c.h.b16 %v1020
      %v1092 = vunpack.c.l.b16 %v1021
      %v1093 = vunpack.c.l.b16 %v1022
      %v1094 = vunpack.c.h.b16 %v1022
      %v1095 = vunpack.c.l.b16 %v1023
      %v1096 = vunpack.c.l.b16 %v1024
      %v1097 = vunpack.c.h.b16 %v1024
      %v1098 = vunpack.c.l.b16 %v1025
      %v1099 = vunpack.c.l.b16 %v1026
      %v1100 = vunpack.c.h.b16 %v1026
      %v1101 = vunpack.c.l.b16 %v1027
      %v1102 = vunpack.c.l.b16 %v1028
      %v1103 = vunpack.c.h.b16 %v1028
      %v1104 = vunpack.c.l.b16 %v1029
      %v1105 = vunpack.c.l.b16 %v1030
      %v1106 = vunpack.c.h.b16 %v1030
      %v1107 = vunpack.c.l.b16 %v1031
      %v1108 = vunpack.c.l.b16 %v1032
      %v1109 = vunpack.c.h.b16 %v1032
      %v1110 = vunpack.c.l.b16 %v1033
      %v1111 = vunpack.c.l.b16 %v1034
      %v1112 = vunpack.c.h.b16 %v1034
      %v1113 = vunpack.c.l.b16 %v1035
      %v1114 = vunpack.c.l.b16 %v1036
      %v1115 = vunpack.c.h.b16 %v1036
      %v1116 = vunpack.c.l.b16 %v1037
      %v1117 = vunpack.c.l.b16 %v1038
      %v1118 = vunpack.c.h.b16 %v1038
      %v1119 = vunpack.c.l.b16 %v1039
      %v1120 = vpack.c.b16 %v1075, %v1072
      %v1121 = vpack.c.b16 %v1076, %v1073
      %v1122 = vpack.c.b16 %v1077, %v1074
      %v1123 = vpack.c.b16 %v1081, %v1078
      %v1124 = vpack.c.b16 %v1082, %v1079
      %v1125 = vpack.c.b16 %v1083, %v1080
      %v1126 = vpack.c.b16 %v1087, %v1084
      %v1127 = vpack.c.b16 %v1088, %v1085
      %v1128 = vpack.c.b16 %v1089, %v1086
      %v1129 = vpack.c.b16 %v1093, %v1090
      %v1130 = vpack.c.b16 %v1094, %v1091
      %v1131 = vpack.c.b16 %v1095, %v1092
      %v1132 = vpack.c.b16 %v1099, %v1096
      %v1133 = vpack.c.b16 %v1100, %v1097
      %v1134 = vpack.c.b16 %v1101, %v1098
      %v1135 = vpack.c.b16 %v1105, %v1102
      %v1136 = vpack.c.b16 %v1106, %v1103
      %v1137 = vpack.c.b16 %v1107, %v1104
      %v1138 = vpack.c.b16 %v1111, %v1108
      %v1139 = vpack.c.b16 %v1112, %v1109
      %v1140 = vpack.c.b16 %v1113, %v1110
      %v1141 = vpack.c.b16 %v1117, %v1114
      %v1142 = vpack.c.b16 %v1118, %v1115
      %v1143 = vpack.c.b16 %v1119, %v1116
      %1168 = vmatprep.subr.bf16.mxu0 %v1121
      %1169 = vmatpush1.bf16.msra.mxu0 %v1120
      %1170 = vmatprep.subr.bf16.mxu0 %v1124
      %1171 = vmatpush1.bf16.msra.mxu0 %v1123
      %1172 = vmatprep.subr.bf16.mxu0 %v1127
      %1173 = vmatpush1.bf16.msra.mxu0 %v1126
      %1174 = vmatprep.subr.bf16.mxu0 %v1130
      %1175 = vmatpush1.bf16.msra.mxu0 %v1129
      %1176 = vmatprep.subr.bf16.mxu0 %v1133
      %1177 = vmatpush1.bf16.msra.mxu0 %v1132
      %1178 = vmatprep.subr.bf16.mxu0 %v1136
      %1179 = vmatpush1.bf16.msra.mxu0 %v1135
      %1180 = vmatprep.subr.bf16.mxu0 %v1139
      %1181 = vmatpush1.bf16.msra.mxu0 %v1138
      %1182 = vmatprep.subr.bf16.mxu0 %v1142
      %1183 = vmatpush1.bf16.msra.mxu0 %v1141
      %1184 = vmatprep.subr.bf16.mxu0 0
      %1185 = vmatpush1.bf16.msra.mxu0 0
      %1186 = vmatprep.subr.bf16.mxu0 0
      %1187 = vmatpush1.bf16.msra.mxu0 0
      %1188 = vmatprep.subr.bf16.mxu0 0
      %1189 = vmatpush1.bf16.msra.mxu0 0
      %1190 = vmatprep.subr.bf16.mxu0 0
      %1191 = vmatpush1.bf16.msra.mxu0 0
      %1192 = vmatprep.subr.bf16.mxu0 0
      %1193 = vmatpush1.bf16.msra.mxu0 0
      %1194 = vmatprep.subr.bf16.mxu0 0
      %1195 = vmatpush1.bf16.msra.mxu0 0
      %1196 = vmatprep.subr.bf16.mxu0 0
      %1197 = vmatpush1.bf16.msra.mxu0 0
      %1198 = vmatprep.subr.bf16.mxu0 0
      %1199 = vmatpush1.bf16.msra.mxu0 0
      %1200 = vmatprep.mubr.bf16.mxu0 0
      %1201 = vmatmul.mubr.bf16.gmra.mrb[0].mxu0 %v1007
      %v1202 = vpop.f32.mrb[0].mxu0
      %v1203 = vadd.f32 0.0, %v1202
      %v1204 = vpop.f32.mrb[0].mxu0
      %v1205 = vadd.f32 0.0, %v1204
      %v1206 = vpop.f32.mrb[0].mxu0
      %v1207 = vadd.f32 0.0, %v1206
      %v1208 = vpop.f32.mrb[0].mxu0
      %v1209 = vadd.f32 0.0, %v1208
      %1210 = vdwg.mxu0
      %1211 = vmatprep.subr.bf16.mxu0 0
      %1212 = vmatpush1.bf16.msra.mxu0 %v1122
      %1213 = vmatprep.subr.bf16.mxu0 0
      %1214 = vmatpush1.bf16.msra.mxu0 %v1125
      %1215 = vmatprep.subr.bf16.mxu0 0
      %1216 = vmatpush1.bf16.msra.mxu0 %v1128
      %1217 = vmatprep.subr.bf16.mxu0 0
      %1218 = vmatpush1.bf16.msra.mxu0 %v1131
      %1219 = vmatprep.subr.bf16.mxu0 0
      %1220 = vmatpush1.bf16.msra.mxu0 %v1134
      %1221 = vmatprep.subr.bf16.mxu0 0
      %1222 = vmatpush1.bf16.msra.mxu0 %v1137
      %1223 = vmatprep.subr.bf16.mxu0 0
      %1224 = vmatpush1.bf16.msra.mxu0 %v1140
      %1225 = vmatprep.subr.bf16.mxu0 0
      %1226 = vmatpush1.bf16.msra.mxu0 %v1143
      %1227 = vmatprep.subr.bf16.mxu0 0
      %1228 = vmatpush1.bf16.msra.mxu0 0
      %1229 = vmatprep.subr.bf16.mxu0 0
      %1230 = vmatpush1.bf16.msra.mxu0 0
      %1231 = vmatprep.subr.bf16.mxu0 0
      %1232 = vmatpush1.bf16.msra.mxu0 0
      %1233 = vmatprep.subr.bf16.mxu0 0
      %1234 = vmatpush1.bf16.msra.mxu0 0
      %1235 = vmatprep.subr.bf16.mxu0 0
      %1236 = vmatpush1.bf16.msra.mxu0 0
      %1237 = vmatprep.subr.bf16.mxu0 0
      %1238 = vmatpush1.bf16.msra.mxu0 0
      %1239 = vmatprep.subr.bf16.mxu0 0
      %1240 = vmatpush1.bf16.msra.mxu0 0
      %1241 = vmatprep.subr.bf16.mxu0 0
      %1242 = vmatpush1.bf16.msra.mxu0 0
      %1243 = vmatprep.mubr.bf16.mxu0 0
      %1244 = vmatmul.mubr.bf16.gmra.mrb[0].mxu0 %v1007
      %v1245 = vpop.f32.mrb[0].mxu0
      %v1246 = vadd.f32 0.0, %v1245
      %v1247 = vpop.f32.mrb[0].mxu0
      %v1248 = vpop.f32.mrb[0].mxu0
      %v1249 = vadd.f32 0.0, %v1248
      %v1250 = vpop.f32.mrb[0].mxu0
      %1251 = vdwg.mxu0
      %1252 = vmatprep.subr.mxu0 0.0
      %1253 = vmatpush1.msra.mxu0 %v1203
      %1254 = vmatprep.subr.mxu0 0.0
      %1255 = vmatpush1.msra.mxu0 %v1207
      %1256 = vmatprep.subr.mxu0 0.0
      %1257 = vmatpush1.msra.mxu0 0.0
      %1258 = vmatprep.subr.mxu0 0.0
      %1259 = vmatpush1.msra.mxu0 0.0
      %1260 = vmatprep.subr.mxu0 0.0
      %1261 = vmatpush1.msra.mxu0 0.0
      %1262 = vmatprep.subr.mxu0 0.0
      %1263 = vmatpush1.msra.mxu0 0.0
      %1264 = vmatprep.subr.mxu0 0.0
      %1265 = vmatpush1.msra.mxu0 0.0
      %1266 = vmatprep.subr.mxu0 0.0
      %1267 = vmatpush1.msra.mxu0 0.0
      %1268 = vmatprep.subr.mxu0 0.0
      %1269 = vmatpush1.msra.mxu0 0.0
      %1270 = vmatprep.subr.mxu0 0.0
      %1271 = vmatpush1.msra.mxu0 0.0
      %1272 = vmatprep.subr.mxu0 0.0
      %1273 = vmatpush1.msra.mxu0 0.0
      %1274 = vmatprep.subr.mxu0 0.0
      %1275 = vmatpush1.msra.mxu0 0.0
      %1276 = vmatprep.subr.mxu0 0.0
      %1277 = vmatpush1.msra.mxu0 0.0
      %1278 = vmatprep.subr.mxu0 0.0
      %1279 = vmatpush1.msra.mxu0 0.0
      %1280 = vmatprep.subr.mxu0 0.0
      %1281 = vmatpush1.msra.mxu0 0.0
      %1282 = vmatprep.subr.mxu0 0.0
      %1283 = vmatpush1.msra.mxu0 0.0
      %1284 = vmatprep.subr.mxu0 0.0
      %1285 = vmatpush1.msra.mxu0 0.0
      %1286 = vmatprep.subr.mxu0 0.0
      %1287 = vmatpush1.msra.mxu0 0.0
      %1288 = vmatprep.subr.mxu0 0.0
      %1289 = vmatpush1.msra.mxu0 0.0
      %1290 = vmatprep.subr.mxu0 0.0
      %1291 = vmatpush1.msra.mxu0 0.0
      %1292 = vmatprep.subr.mxu0 0.0
      %1293 = vmatpush1.msra.mxu0 0.0
      %1294 = vmatprep.subr.mxu0 0.0
      %1295 = vmatpush1.msra.mxu0 0.0
      %1296 = vmatprep.subr.mxu0 0.0
      %1297 = vmatpush1.msra.mxu0 0.0
      %1298 = vmatprep.subr.mxu0 0.0
      %1299 = vmatpush1.msra.mxu0 0.0
      %1300 = vmatprep.subr.mxu0 0.0
      %1301 = vmatpush1.msra.mxu0 0.0
      %1302 = vmatprep.subr.mxu0 0.0
      %1303 = vmatpush1.msra.mxu0 0.0
      %1304 = vmatprep.subr.mxu0 0.0
      %1305 = vmatpush1.msra.mxu0 0.0
      %1306 = vmatprep.subr.mxu0 0.0
      %1307 = vmatpush1.msra.mxu0 0.0
      %1308 = vmatprep.subr.mxu0 0.0
      %1309 = vmatpush1.msra.mxu0 0.0
      %1310 = vmatprep.subr.mxu0 0.0
      %1311 = vmatpush1.msra.mxu0 0.0
      %1312 = vmatprep.subr.mxu0 0.0
      %1313 = vmatpush1.msra.mxu0 0.0
      %1314 = vmatprep.subr.mxu0 0.0
      %1315 = vmatpush1.msra.mxu0 0.0
      %1316 = vmatprep.mubr.f32.mxu0 0.0
      %1317 = vmatmul.mubr.f32.gmra.mrb[0].mxu0 %v647
      %v1318 = vpop.f32.mrb[0].mxu0
      %v1319 = vadd.f32 %v1205, %v1318
      %v1320 = vpop.f32.mrb[0].mxu0
      %1321 = vmatprep.mubr.f32.mxu0 0.0
      %1322 = vmatmul.mubr.f32.gmra.mrb[0].mxu0 %v650
      %v1323 = vpop.f32.mrb[0].mxu0
      %v1324 = vadd.f32 %v1209, %v1323
      %v1325 = vpop.f32.mrb[0].mxu0
      %1326 = vdwg.mxu0
      %1327 = vmatprep.subr.mxu0 0.0
      %1328 = vmatpush1.msra.mxu0 %v1246
      %1329 = vmatprep.subr.mxu0 0.0
      %1330 = vmatpush1.msra.mxu0 %v1249
      %1331 = vmatprep.subr.mxu0 0.0
      %1332 = vmatpush1.msra.mxu0 0.0
      %1333 = vmatprep.subr.mxu0 0.0
      %1334 = vmatpush1.msra.mxu0 0.0
      %1335 = vmatprep.subr.mxu0 0.0
      %1336 = vmatpush1.msra.mxu0 0.0
      %1337 = vmatprep.subr.mxu0 0.0
      %1338 = vmatpush1.msra.mxu0 0.0
      %1339 = vmatprep.subr.mxu0 0.0
      %1340 = vmatpush1.msra.mxu0 0.0
      %1341 = vmatprep.subr.mxu0 0.0
      %1342 = vmatpush1.msra.mxu0 0.0
      %1343 = vmatprep.subr.mxu0 0.0
      %1344 = vmatpush1.msra.mxu0 0.0
      %1345 = vmatprep.subr.mxu0 0.0
      %1346 = vmatpush1.msra.mxu0 0.0
      %1347 = vmatprep.subr.mxu0 0.0
      %1348 = vmatpush1.msra.mxu0 0.0
      %1349 = vmatprep.subr.mxu0 0.0
      %1350 = vmatpush1.msra.mxu0 0.0
      %1351 = vmatprep.subr.mxu0 0.0
      %1352 = vmatpush1.msra.mxu0 0.0
      %1353 = vmatprep.subr.mxu0 0.0
      %1354 = vmatpush1.msra.mxu0 0.0
      %1355 = vmatprep.subr.mxu0 0.0
      %1356 = vmatpush1.msra.mxu0 0.0
      %1357 = vmatprep.subr.mxu0 0.0
      %1358 = vmatpush1.msra.mxu0 0.0
      %1359 = vmatprep.subr.mxu0 0.0
      %1360 = vmatpush1.msra.mxu0 0.0
      %1361 = vmatprep.subr.mxu0 0.0
      %1362 = vmatpush1.msra.mxu0 0.0
      %1363 = vmatprep.subr.mxu0 0.0
      %1364 = vmatpush1.msra.mxu0 0.0
      %1365 = vmatprep.subr.mxu0 0.0
      %1366 = vmatpush1.msra.mxu0 0.0
      %1367 = vmatprep.subr.mxu0 0.0
      %1368 = vmatpush1.msra.mxu0 0.0
      %1369 = vmatprep.subr.mxu0 0.0
      %1370 = vmatpush1.msra.mxu0 0.0
      %1371 = vmatprep.subr.mxu0 0.0
      %1372 = vmatpush1.msra.mxu0 0.0
      %1373 = vmatprep.subr.mxu0 0.0
      %1374 = vmatpush1.msra.mxu0 0.0
      %1375 = vmatprep.subr.mxu0 0.0
      %1376 = vmatpush1.msra.mxu0 0.0
      %1377 = vmatprep.subr.mxu0 0.0
      %1378 = vmatpush1.msra.mxu0 0.0
      %1379 = vmatprep.subr.mxu0 0.0
      %1380 = vmatpush1.msra.mxu0 0.0
      %1381 = vmatprep.subr.mxu0 0.0
      %1382 = vmatpush1.msra.mxu0 0.0
      %1383 = vmatprep.subr.mxu0 0.0
      %1384 = vmatpush1.msra.mxu0 0.0
      %1385 = vmatprep.subr.mxu0 0.0
      %1386 = vmatpush1.msra.mxu0 0.0
      %1387 = vmatprep.subr.mxu0 0.0
      %1388 = vmatpush1.msra.mxu0 0.0
      %1389 = vmatprep.subr.mxu0 0.0
      %1390 = vmatpush1.msra.mxu0 0.0
      %1391 = vmatprep.mubr.f32.mxu0 0.0
      %1392 = vmatmul.mubr.f32.gmra.mrb[0].mxu0 %v728
      %v1393 = vpop.f32.mrb[0].mxu0
      %v1394 = vadd.f32 0.0, %v1393
      %v1395 = vpop.f32.mrb[0].mxu0
      %1396 = vmatprep.mubr.f32.mxu0 0.0
      %1397 = vmatmul.mubr.f32.gmra.mrb[0].mxu0 %v731
      %v1398 = vpop.f32.mrb[0].mxu0
      %v1399 = vadd.f32 0.0, %v1398
      %v1400 = vpop.f32.mrb[0].mxu0
      %1401 = vdwg.mxu0
      %v1402 = vadd.f32 %v1319, %v1394
      %v1403 = vadd.f32 %v1324, %v1399
      %v1404 = vld [vmem:[%s6] sm:$0x1]
      %v1406 = vlaneseq
      %v1407 = vshrl.u32 %v1406, 7
      %v1408 = vsub.s32 0, %v1407
      %v1409 = vrot.slane %v1404, %v1408
      %v1411 = vadd.f32 %v1402, %v1409
      %v1412 = vadd.f32 %v1403, %v1409
      %v1413 = vadd.f32 %v1411, %v1412
      %v1414 = vrot.slane %v1413, 4
      %v1415 = vadd.f32 %v1413, %v1414
      %v1416 = vrot.slane %v1415, 2
      %v1417 = vadd.f32 %v1415, %v1416
      %v1418 = vrot.slane %v1417, 1
      %v1419 = vadd.f32 %v1417, %v1418
      %v1420 = vmul.f32 %v1411, %v1411
      %v1421 = vmul.f32 %v1412, %v1412
      %v1422 = vadd.f32 %v1420, %v1421
      %v1423 = vrot.slane %v1422, 4
      %v1424 = vadd.f32 %v1422, %v1423
      %v1425 = vrot.slane %v1424, 2
      %v1426 = vadd.f32 %v1424, %v1425
      %v1427 = vrot.slane %v1426, 1
      %v1428 = vadd.f32 %v1426, %v1427
      %1429 = vmatprep.subr.mxu0 0.0
      %1430 = vmatpush1.msra.mxu0 %v382
      %1431 = vmatprep.subr.mxu0 0.0
      %1432 = vmatpush1.msra.mxu0 %v383
      %1433 = vmatprep.subr.mxu0 0.0
      %1434 = vmatpush1.msra.mxu0 %v384
      %1435 = vmatprep.subr.mxu0 0.0
      %1436 = vmatpush1.msra.mxu0 %v385
      %1437 = vmatprep.subr.mxu0 0.0
      %1438 = vmatpush1.msra.mxu0 %v386
      %1439 = vmatprep.subr.mxu0 0.0
      %1440 = vmatpush1.msra.mxu0 %v387
      %1441 = vmatprep.subr.mxu0 0.0
      %1442 = vmatpush1.msra.mxu0 %v388
      %1443 = vmatprep.subr.mxu0 0.0
      %1444 = vmatpush1.msra.mxu0 %v389
      %1445 = vmatprep.subr.mxu0 0.0
      %1446 = vmatpush1.msra.mxu0 %v390
      %1447 = vmatprep.subr.mxu0 0.0
      %1448 = vmatpush1.msra.mxu0 %v391
      %1449 = vmatprep.subr.mxu0 0.0
      %1450 = vmatpush1.msra.mxu0 %v392
      %1451 = vmatprep.subr.mxu0 0.0
      %1452 = vmatpush1.msra.mxu0 %v393
      %1453 = vmatprep.subr.mxu0 0.0
      %1454 = vmatpush1.msra.mxu0 %v394
      %1455 = vmatprep.subr.mxu0 0.0
      %1456 = vmatpush1.msra.mxu0 %v395
      %1457 = vmatprep.subr.mxu0 0.0
      %1458 = vmatpush1.msra.mxu0 %v396
      %1459 = vmatprep.subr.mxu0 0.0
      %1460 = vmatpush1.msra.mxu0 %v397
      %1461 = vmatprep.subr.mxu0 0.0
      %1462 = vmatpush1.msra.mxu0 0.0
      %1463 = vmatprep.subr.mxu0 0.0
      %1464 = vmatpush1.msra.mxu0 0.0
      %1465 = vmatprep.subr.mxu0 0.0
      %1466 = vmatpush1.msra.mxu0 0.0
      %1467 = vmatprep.subr.mxu0 0.0
      %1468 = vmatpush1.msra.mxu0 0.0
      %1469 = vmatprep.subr.mxu0 0.0
      %1470 = vmatpush1.msra.mxu0 0.0
      %1471 = vmatprep.subr.mxu0 0.0
      %1472 = vmatpush1.msra.mxu0 0.0
      %1473 = vmatprep.subr.mxu0 0.0
      %1474 = vmatpush1.msra.mxu0 0.0
      %1475 = vmatprep.subr.mxu0 0.0
      %1476 = vmatpush1.msra.mxu0 0.0
      %1477 = vmatprep.subr.mxu0 0.0
      %1478 = vmatpush1.msra.mxu0 0.0
      %1479 = vmatprep.subr.mxu0 0.0
      %1480 = vmatpush1.msra.mxu0 0.0
      %1481 = vmatprep.subr.mxu0 0.0
      %1482 = vmatpush1.msra.mxu0 0.0
      %1483 = vmatprep.subr.mxu0 0.0
      %1484 = vmatpush1.msra.mxu0 0.0
      %1485 = vmatprep.subr.mxu0 0.0
      %1486 = vmatpush1.msra.mxu0 0.0
      %1487 = vmatprep.subr.mxu0 0.0
      %1488 = vmatpush1.msra.mxu0 0.0
      %1489 = vmatprep.subr.mxu0 0.0
      %1490 = vmatpush1.msra.mxu0 0.0
      %1491 = vmatprep.subr.mxu0 0.0
      %1492 = vmatpush1.msra.mxu0 0.0
      %1493 = vmatprep.mubr.f32.mxu0 0.0
      %1494 = vmatmul.mubr.f32.gmra.mrb[0].mxu0 %v1419
      %v1495 = vpop.f32.mrb[0].mxu0
      %v1496 = vadd.f32 0.0, %v1495
      %v1497 = vpop.f32.mrb[0].mxu0
      %1498 = vdwg.mxu0
      %v1499 = vmul.f32 %v1496, 0.00390625
      %1500 = vmatprep.subr.mxu0 0.0
      %1501 = vmatpush1.msra.mxu0 %v382
      %1502 = vmatprep.subr.mxu0 0.0
      %1503 = vmatpush1.msra.mxu0 %v383
      %1504 = vmatprep.subr.mxu0 0.0
      %1505 = vmatpush1.msra.mxu0 %v384
      %1506 = vmatprep.subr.mxu0 0.0
      %1507 = vmatpush1.msra.mxu0 %v385
      %1508 = vmatprep.subr.mxu0 0.0
      %1509 = vmatpush1.msra.mxu0 %v386
      %1510 = vmatprep.subr.mxu0 0.0
      %1511 = vmatpush1.msra.mxu0 %v387
      %1512 = vmatprep.subr.mxu0 0.0
      %1513 = vmatpush1.msra.mxu0 %v388
      %1514 = vmatprep.subr.mxu0 0.0
      %1515 = vmatpush1.msra.mxu0 %v389
      %1516 = vmatprep.subr.mxu0 0.0
      %1517 = vmatpush1.msra.mxu0 %v390
      %1518 = vmatprep.subr.mxu0 0.0
      %1519 = vmatpush1.msra.mxu0 %v391
      %1520 = vmatprep.subr.mxu0 0.0
      %1521 = vmatpush1.msra.mxu0 %v392
      %1522 = vmatprep.subr.mxu0 0.0
      %1523 = vmatpush1.msra.mxu0 %v393
      %1524 = vmatprep.subr.mxu0 0.0
      %1525 = vmatpush1.msra.mxu0 %v394
      %1526 = vmatprep.subr.mxu0 0.0
      %1527 = vmatpush1.msra.mxu0 %v395
      %1528 = vmatprep.subr.mxu0 0.0
      %1529 = vmatpush1.msra.mxu0 %v396
      %1530 = vmatprep.subr.mxu0 0.0
      %1531 = vmatpush1.msra.mxu0 %v397
      %1532 = vmatprep.subr.mxu0 0.0
      %1533 = vmatpush1.msra.mxu0 0.0
      %1534 = vmatprep.subr.mxu0 0.0
      %1535 = vmatpush1.msra.mxu0 0.0
      %1536 = vmatprep.subr.mxu0 0.0
      %1537 = vmatpush1.msra.mxu0 0.0
      %1538 = vmatprep.subr.mxu0 0.0
      %1539 = vmatpush1.msra.mxu0 0.0
      %1540 = vmatprep.subr.mxu0 0.0
      %1541 = vmatpush1.msra.mxu0 0.0
      %1542 = vmatprep.subr.mxu0 0.0
      %1543 = vmatpush1.msra.mxu0 0.0
      %1544 = vmatprep.subr.mxu0 0.0
      %1545 = vmatpush1.msra.mxu0 0.0
      %1546 = vmatprep.subr.mxu0 0.0
      %1547 = vmatpush1.msra.mxu0 0.0
      %1548 = vmatprep.subr.mxu0 0.0
      %1549 = vmatpush1.msra.mxu0 0.0
      %1550 = vmatprep.subr.mxu0 0.0
      %1551 = vmatpush1.msra.mxu0 0.0
      %1552 = vmatprep.subr.mxu0 0.0
      %1553 = vmatpush1.msra.mxu0 0.0
      %1554 = vmatprep.subr.mxu0 0.0
      %1555 = vmatpush1.msra.mxu0 0.0
      %1556 = vmatprep.subr.mxu0 0.0
      %1557 = vmatpush1.msra.mxu0 0.0
      %1558 = vmatprep.subr.mxu0 0.0
      %1559 = vmatpush1.msra.mxu0 0.0
      %1560 = vmatprep.subr.mxu0 0.0
      %1561 = vmatpush1.msra.mxu0 0.0
      %1562 = vmatprep.subr.mxu0 0.0
      %1563 = vmatpush1.msra.mxu0 0.0
      %1564 = vmatprep.mubr.f32.mxu0 0.0
      %1565 = vmatmul.mubr.f32.gmra.mrb[0].mxu0 %v1428
      %v1566 = vpop.f32.mrb[0].mxu0
      %v1567 = vadd.f32 0.0, %v1566
      %v1568 = vpop.f32.mrb[0].mxu0
      %1569 = vdwg.mxu0
      %v1570 = vmul.f32 %v1567, 0.00390625
      %v1571 = vmul.f32 %v1499, %v1499
      %v1572 = vsub.f32 %v1570, %v1571
      %v1573 = vmax.f32 %v1572, 0.0
      %v1574 = vadd.f32 %v1573, 1e-05
      %v1575 = vrsqrt.pop %v1574
      %v1576 = vlaneseq
      %v1577 = vshrl.u32 %v1576, 7
      %v1578 = vsub.s32 0, %v1577
      %v1579 = vrot.slane %v1499, %v1578
      %v1580 = vsub.f32 %v1411, %v1579
      %v1581 = vsub.f32 %v1412, %v1579
      %v1582 = vld [vmem:[%s7] sm:$0x1]
      %v1583 = vmul.f32 %v1575, %v1582
      %v1584 = vlaneseq
      %v1585 = vshrl.u32 %v1584, 7
      %v1586 = vsub.s32 0, %v1585
      %v1587 = vrot.slane %v1583, %v1586
      %v1588 = vmul.f32 %v1580, %v1587
      %v1589 = vmul.f32 %v1581, %v1587
      %v1590 = vld [vmem:[%s8] sm:$0x1]
      %v1592 = vlaneseq
      %v1593 = vshrl.u32 %v1592, 7
      %v1594 = vsub.s32 0, %v1593
      %v1595 = vrot.slane %v1590, %v1594
      %v1597 = vadd.f32 %v1588, %v1595
      %v1598 = vadd.f32 %v1589, %v1595
      %v1599 = vmax.f32 %v1597, 0.0
      %v1600 = vmax.f32 %v1598, 0.0
      %1601 = vst [vmem:[%s359] sm:$0xff] %v1599
      %1602 = vst [vmem:[%s359 + $0x8] sm:$0xff] %v1600
      %p1603 = scmp.lt.s32.totalorder %s21, 1
      %s1604 = scalar_select %p1603, %s21, 1
      %s1605 = smul.addr %s1604, 2
      %s1606 = smul.addr %s1605, 8
      %s1607 = scalar_lea.vmem %s10, %s1606
      // Predicated region
      $region61: #{polyoutdecblock_forward.1} parent=59 // pred_check
        %p1608 = pneg %p254
      $region62: #{polyoutdecblock_forward.1} parent=59 // pred_check_branch
        %1610 = sbr.rel (%p1608) target = $region64
      $region63: #{polyoutdecblock_forward.1} parent=59 // pred_region
        _
      $region64: #{polyoutdecblock_forward.1} parent=59 // pred_fallthru
        _
    $region60: #{polyoutdecblock_forward.1} parent=5 // pred_fallthru
      _
    %p1611 = scmp.le.s32.totalorder 2, %s16
    // Predicated region
    $region65: #{polyoutdecblock_forward.1} parent=5 // pred_check
      %p1612 = pneg %p1611
    $region66: #{polyoutdecblock_forward.1} parent=5 // pred_check_branch
      %1614 = sbr.rel (%p1612) target = $region68
    $region67: #{polyoutdecblock_forward.1} parent=5 // pred_region
      %s1615 = ssub.s32 %s16, 2
      // Predicated region
      $region69: #{polyoutdecblock_forward.1} parent=67 // pred_check
        %p1616 = pneg %p260
      $region70: #{polyoutdecblock_forward.1} parent=67 // pred_check_branch
        %1618 = sbr.rel (%p1616) target = $region72
      $region71: #{polyoutdecblock_forward.1} parent=67 // pred_region
        %p1619 = scmp.lt.s32.totalorder %s22, 1
        %s1620 = scalar_select %p1619, %s22, 1
        %s1621 = smul.addr %s1620, 2
        %s1622 = smul.addr %s1621, 8
        %s1623 = scalar_lea.vmem %s10, %s1622
      $region72: #{polyoutdecblock_forward.1} parent=67 // pred_fallthru
        _
    $region68: #{polyoutdecblock_forward.1} parent=5 // pred_fallthru
      _
  $region6: #{polyoutdecblock_forward.1} parent=0 // loop_footer
    %s20 = sadd.s32 1, %s16
  $region7: #{polyoutdecblock_forward.1} parent=0 // loop_footer_branch
    %15 = sbr.rel target = $region3
  $region8: #{polyoutdecblock_forward.1} parent=0 // loop_exit
    _

</llo_original>
